<compile_context>
chip_gen: v7x
topology: tpu7x:2x2x1
jax: 0.10.0
libtpu: 0.0.40
codegen_flags: <defaults>
</compile_context>

<pallas_src>
import jax
import jax.numpy as jnp
from jax.experimental import pallas as pl
from jax.experimental.pallas import tpu as pltpu

# ---------------- problem sizes (small, consistent with the module) ----------
B = 2          # batch
S = 8          # sequence length
H = 32         # hidden_size
NH = 4         # num_attention_heads
DH = H // NH   # attention_head_size
I = 64         # intermediate_size
EPS = 1e-5     # nn.LayerNorm default eps

LANES = 128
W_ROWS = 3 * H + I   # 160 rows in the packed weight slab (multiple of 16)


# ------------------------------ Pallas kernel --------------------------------
def transformer_layer_kernel(x_ref, w_ref, v_ref, o_ref):
    """Whole transformer layer in one invocation.

    x_ref : (B*S, H)       f32   activations, batch folded into the row axis
    w_ref : (W_ROWS, 128)  bf16  packed weights:
                             rows [0,  H)      lanes [0, 3H) : [Wq | Wk | Wv]
                             rows [H,  2H)     lanes [0, H)  : Wd   (attn dense)
                             rows [2H, 3H)     lanes [0, I)  : Wi   (intermediate)
                             rows [3H, 3H+I)   lanes [0, H)  : Wo   (output dense)
    v_ref : (8, 128)       f32   packed vectors:
                             row 0: [bq | bk | bv]   row 1: bd
                             row 2: g1   row 3: beta1
                             row 4: bi   row 5: g2   row 6: beta2   row 7: bo
    o_ref : (B, S, H)      f32
    """
    x = x_ref[...]                                    # (B*S, H) f32
    xb = x.astype(jnp.bfloat16)

    # ---- fused Q/K/V projection: one (B*S,H) @ (H,3H) matmul ----
    wqkv = w_ref[0:H, 0:3 * H]                        # (H, 3H) bf16
    bqkv = v_ref[0:1, 0:3 * H]                        # (1, 3H) f32
    qkv = jnp.dot(xb, wqkv, preferred_element_type=jnp.float32) + bqkv    # (B*S, 3H)

    # ---- attention core: static head loop, batched over B via einsum ----
    scale = 1.0 / (float(DH) ** 0.5)
    ctx_parts = []
    for h in range(NH):                               # NH = 4, fully unrolled
        lo = h * DH
        q = qkv[:, lo:lo + DH].reshape(B, S, DH)              # sublane-split only
        k = qkv[:, H + lo:H + lo + DH].reshape(B, S, DH)
        v = qkv[:, 2 * H + lo:2 * H + lo + DH].reshape(B, S, DH)
        s = jnp.einsum("bqd,bkd->bqk", q, k,
                       preferred_element_type=jnp.float32) * scale        # (B, S, S)
        s = s - jnp.max(s, axis=-1, keepdims=True)
        e = jnp.exp(s)
        p = e * pl.reciprocal(jnp.sum(e, axis=-1, keepdims=True), approx=True)
        ctx = jnp.einsum("bqk,bkd->bqd", p, v,
                         preferred_element_type=jnp.float32)               # (B, S, DH)
        ctx_parts.append(ctx.reshape(B * S, DH))
    # concat-of-heads along lanes == context_layer.view(..., all_head_size)
    ctx2d = jnp.concatenate(ctx_parts, axis=-1)        # (B*S, H)

    # ---- attention output dense: single (B*S,H) @ (H,H) matmul ----
    wd = w_ref[H:2 * H, 0:H]
    bd = v_ref[1:2, 0:H]
    attn = jnp.dot(ctx2d.astype(jnp.bfloat16), wd,
                   preferred_element_type=jnp.float32) + bd

    # ---- residual + LayerNorm (dropout = identity) ----
    g1 = v_ref[2:3, 0:H]
    beta1 = v_ref[3:4, 0:H]
    res1 = attn + x
    mu1 = jnp.mean(res1, axis=-1, keepdims=True)
    var1 = jnp.mean((res1 - mu1) * (res1 - mu1), axis=-1, keepdims=True)
    h1 = (res1 - mu1) * jax.lax.rsqrt(var1 + EPS) * g1 + beta1

    # ---- intermediate linear ----
    wi = w_ref[2 * H:3 * H, 0:I]
    bi = v_ref[4:5, 0:I]
    inter = jnp.dot(h1.astype(jnp.bfloat16), wi,
                    preferred_element_type=jnp.float32) + bi               # (B*S, I)

    # ---- output block: LayerNorm -> ReLU -> Linear (dropout = identity) ----
    g2 = v_ref[5:6, 0:I]
    beta2 = v_ref[6:7, 0:I]
    mu2 = jnp.mean(inter, axis=-1, keepdims=True)
    var2 = jnp.mean((inter - mu2) * (inter - mu2), axis=-1, keepdims=True)
    ln2 = (inter - mu2) * jax.lax.rsqrt(var2 + EPS) * g2 + beta2
    act = jnp.maximum(ln2, 0.0)
    wo = w_ref[3 * H:3 * H + I, 0:H]
    bo = v_ref[7:8, 0:H]
    out = jnp.dot(act.astype(jnp.bfloat16), wo,
                  preferred_element_type=jnp.float32) + bo

    # ---- final residual (residual is the post-LN hidden state h1) ----
    o_ref[...] = (out + h1).reshape(B, S, H)


# ------------------------------- wrapper --------------------------------------
@jax.jit
def transformer_layer(x, w_slab, v_slab):
    x2d = x.reshape(B * S, H)                          # fold batch into rows
    return pl.pallas_call(
        transformer_layer_kernel,
        out_shape=jax.ShapeDtypeStruct((B, S, H), jnp.float32),
        in_specs=[
            pl.BlockSpec(memory_space=pltpu.MemorySpace.VMEM),
            pl.BlockSpec(memory_space=pltpu.MemorySpace.VMEM),
            pl.BlockSpec(memory_space=pltpu.MemorySpace.VMEM),
        ],
        out_specs=pl.BlockSpec(memory_space=pltpu.MemorySpace.VMEM),
    )(x2d, w_slab, v_slab)


# ------------------------- host-side parameter packing ------------------------
def init_raw_params(key):
    """Raw parameters in the 'x @ W' orientation (W is (in, out))."""
    ks = jax.random.split(key, 16)
    n = lambda k, shape, s=0.05: jax.random.normal(k, shape, jnp.float32) * s
    wq = n(ks[0], (H, H)); bq = n(ks[1], (H,), 0.01)
    wk = n(ks[2], (H, H)); bk = n(ks[3], (H,), 0.01)
    wv = n(ks[4], (H, H)); bv = n(ks[5], (H,), 0.01)
    wd = n(ks[6], (H, H)); bd = n(ks[7], (H,), 0.01)
    g1 = 1.0 + n(ks[8], (H,), 0.1); beta1 = n(ks[9], (H,), 0.05)
    wi = n(ks[10], (H, I)); bi = n(ks[11], (I,), 0.01)
    g2 = 1.0 + n(ks[12], (I,), 0.1); beta2 = n(ks[13], (I,), 0.05)
    wo = n(ks[14], (I, H)); bo = n(ks[15], (H,), 0.01)
    return (wq, bq, wk, bk, wv, bv, wd, bd, g1, beta1, wi, bi, g2, beta2, wo, bo)


def pack_params(raw):
    (wq, bq, wk, bk, wv, bv, wd, bd,
     g1, beta1, wi, bi, g2, beta2, wo, bo) = raw

    # Weight slab (bf16, MXU operands), all matrices at lane offset 0,
    # row offsets multiples of 16 (bf16 sublane tile).
    w = jnp.zeros((W_ROWS, LANES), jnp.float32)
    w = w.at[0:H, 0:H].set(wq)
    w = w.at[0:H, H:2 * H].set(wk)
    w = w.at[0:H, 2 * H:3 * H].set(wv)
    w = w.at[H:2 * H, 0:H].set(wd)
    w = w.at[2 * H:3 * H, 0:I].set(wi)
    w = w.at[3 * H:3 * H + I, 0:H].set(wo)
    w_slab = w.astype(jnp.bfloat16)

    # Vector slab (f32, VPU operands) — exactly one (8, 128) vreg tile.
    v = jnp.zeros((8, LANES), jnp.float32)
    v = v.at[0, 0:H].set(bq)
    v = v.at[0, H:2 * H].set(bk)
    v = v.at[0, 2 * H:3 * H].set(bv)
    v = v.at[1, 0:H].set(bd)
    v = v.at[2, 0:H].set(g1)
    v = v.at[3, 0:H].set(beta1)
    v = v.at[4, 0:I].set(bi)
    v = v.at[5, 0:I].set(g2)
    v = v.at[6, 0:I].set(beta2)
    v = v.at[7, 0:H].set(bo)
    return w_slab, v


# ------------------------- plain-JAX reference (for checking) -----------------
def reference(x, raw):
    (wq, bq, wk, bk, wv, bv, wd, bd,
     g1, beta1, wi, bi, g2, beta2, wo, bo) = raw

    def split_heads(t):   # (B,S,H) -> (B,NH,S,DH)
        return t.reshape(B, S, NH, DH).transpose(0, 2, 1, 3)

    q = split_heads(x @ wq + bq)
    k = split_heads(x @ wk + bk)
    v = split_heads(x @ wv + bv)
    scores = jnp.einsum("bhqd,bhkd->bhqk", q, k) / (float(DH) ** 0.5)
    probs = jax.nn.softmax(scores, axis=-1)
    ctx = jnp.einsum("bhqk,bhkd->bhqd", probs, v)
    ctx = ctx.transpose(0, 2, 1, 3).reshape(B, S, H)
    attn = ctx @ wd + bd

    def ln(t, g, b):
        mu = jnp.mean(t, axis=-1, keepdims=True)
        var = jnp.mean((t - mu) ** 2, axis=-1, keepdims=True)
        return (t - mu) / jnp.sqrt(var + EPS) * g + b

    h1 = ln(attn + x, g1, beta1)
    inter = h1 @ wi + bi
    out = jnp.maximum(ln(inter, g2, beta2), 0.0) @ wo + bo
    return out + h1


# ---------------------------------- main ---------------------------------------
if __name__ == "__main__":
    key = jax.random.PRNGKey(0)
    kx, kp = jax.random.split(key)
    x = jax.random.normal(kx, (B, S, H), jnp.float32)
    raw = init_raw_params(kp)
    w_slab, v_slab = pack_params(raw)

    out = jax.block_until_ready(transformer_layer(x, w_slab, v_slab))
    ref = jax.block_until_ready(reference(x, raw))

    assert out.shape == (B, S, H)
    err = jnp.max(jnp.abs(out - ref))
    assert jnp.allclose(out, ref, atol=5e-2, rtol=5e-2), f"max abs err {err}"

    print("KERNEL_OK")
</pallas_src>

<mosaic_0001>
module attributes {stable_mosaic.version = 11 : i64} {
  func.func @transformer_layer_kernel(%arg0: memref<16x32xf32, #tpu.memory_space<vmem>>, %arg1: memref<160x128xbf16, #tpu.memory_space<vmem>>, %arg2: memref<8x128xf32, #tpu.memory_space<vmem>>, %arg3: memref<2x8x32xf32, #tpu.memory_space<vmem>>) attributes {dimension_semantics = [], scalar_prefetch = 0 : i64, scratch_operands = 0 : i64, tpu.core_type = #tpu.core_type<tc>} {
    %c0 = arith.constant 0 : index
    %c0_0 = arith.constant 0 : index
    %0 = vector.load %arg0[%c0, %c0_0] : memref<16x32xf32, #tpu.memory_space<vmem>>, vector<16x32xf32>
    %1 = arith.truncf %0 : vector<16x32xf32> to vector<16x32xbf16>
    %c0_1 = arith.constant 0 : index
    %c0_2 = arith.constant 0 : index
    %2 = vector.load %arg1[%c0_1, %c0_2] : memref<160x128xbf16, #tpu.memory_space<vmem>>, vector<32x96xbf16>
    %c0_3 = arith.constant 0 : index
    %c0_4 = arith.constant 0 : index
    %3 = vector.load %arg2[%c0_3, %c0_4] : memref<8x128xf32, #tpu.memory_space<vmem>>, vector<1x96xf32>
    %cst = arith.constant dense<0.000000e+00> : vector<16x96xf32>
    %4 = tpu.matmul %1, %2, %cst {dimension_numbers = #tpu.dot_dimension_numbers<[1], [0], [0], [1], [0, 0, 1, 1], [], []>} : vector<16x32xbf16>, vector<32x96xbf16>, vector<16x96xf32> -> vector<16x96xf32>
    %5 = vector.broadcast %3 : vector<1x96xf32> to vector<16x96xf32>
    %6 = arith.addf %4, %5 : vector<16x96xf32>
    %7 = vector.extract_strided_slice %6 {offsets = [0, 0], sizes = [16, 8], strides = [1, 1]} : vector<16x96xf32> to vector<16x8xf32>
    %8 = vector.shape_cast %7 : vector<16x8xf32> to vector<2x8x8xf32>
    %9 = vector.extract_strided_slice %6 {offsets = [0, 32], sizes = [16, 8], strides = [1, 1]} : vector<16x96xf32> to vector<16x8xf32>
    %10 = vector.shape_cast %9 : vector<16x8xf32> to vector<2x8x8xf32>
    %11 = vector.extract_strided_slice %6 {offsets = [0, 64], sizes = [16, 8], strides = [1, 1]} : vector<16x96xf32> to vector<16x8xf32>
    %12 = vector.shape_cast %11 : vector<16x8xf32> to vector<2x8x8xf32>
    "tpu.trace_start"() <{level = 10 : i32, message = "bqd,bkd->bqk"}> : () -> ()
    %cst_5 = arith.constant dense<0.000000e+00> : vector<2x8x8xf32>
    %13 = tpu.matmul %8, %10, %cst_5 {dimension_numbers = #tpu.dot_dimension_numbers<[2], [2], [1], [1], [0, 0, 0, 1, 1, 1], [0], [0]>} : vector<2x8x8xf32>, vector<2x8x8xf32>, vector<2x8x8xf32> -> vector<2x8x8xf32>
    "tpu.trace_stop"() : () -> ()
    %cst_6 = arith.constant 0.353553385 : f32
    %14 = vector.broadcast %cst_6 : f32 to vector<2x8x8xf32>
    %15 = arith.mulf %13, %14 : vector<2x8x8xf32>
    %cst_7 = arith.constant dense<0xFF800000> : vector<2x8xf32>
    %16 = vector.multi_reduction <maximumf>, %15, %cst_7 [2] : vector<2x8x8xf32> to vector<2x8xf32>
    %17 = vector.shape_cast %16 : vector<2x8xf32> to vector<2x8x1xf32>
    %18 = vector.broadcast %17 : vector<2x8x1xf32> to vector<2x8x8xf32>
    %19 = arith.subf %15, %18 : vector<2x8x8xf32>
    %20 = math.exp %19 : vector<2x8x8xf32>
    %cst_8 = arith.constant dense<0.000000e+00> : vector<2x8xf32>
    %21 = vector.multi_reduction <add>, %20, %cst_8 [2] : vector<2x8x8xf32> to vector<2x8xf32>
    %22 = vector.shape_cast %21 : vector<2x8xf32> to vector<2x8x1xf32>
    %23 = tpu.reciprocal %22 {approx = true} : vector<2x8x1xf32> -> vector<2x8x1xf32>
    %24 = vector.broadcast %23 : vector<2x8x1xf32> to vector<2x8x8xf32>
    %25 = arith.mulf %20, %24 : vector<2x8x8xf32>
    "tpu.trace_start"() <{level = 10 : i32, message = "bqk,bkd->bqd"}> : () -> ()
    %cst_9 = arith.constant dense<0.000000e+00> : vector<2x8x8xf32>
    %26 = tpu.matmul %25, %12, %cst_9 {dimension_numbers = #tpu.dot_dimension_numbers<[2], [1], [1], [2], [0, 0, 0, 1, 1, 2], [0], [0]>} : vector<2x8x8xf32>, vector<2x8x8xf32>, vector<2x8x8xf32> -> vector<2x8x8xf32>
    "tpu.trace_stop"() : () -> ()
    %27 = vector.shape_cast %26 : vector<2x8x8xf32> to vector<16x8xf32>
    %28 = vector.extract_strided_slice %6 {offsets = [0, 8], sizes = [16, 8], strides = [1, 1]} : vector<16x96xf32> to vector<16x8xf32>
    %29 = vector.shape_cast %28 : vector<16x8xf32> to vector<2x8x8xf32>
    %30 = vector.extract_strided_slice %6 {offsets = [0, 40], sizes = [16, 8], strides = [1, 1]} : vector<16x96xf32> to vector<16x8xf32>
    %31 = vector.shape_cast %30 : vector<16x8xf32> to vector<2x8x8xf32>
    %32 = vector.extract_strided_slice %6 {offsets = [0, 72], sizes = [16, 8], strides = [1, 1]} : vector<16x96xf32> to vector<16x8xf32>
    %33 = vector.shape_cast %32 : vector<16x8xf32> to vector<2x8x8xf32>
    "tpu.trace_start"() <{level = 10 : i32, message = "bqd,bkd->bqk"}> : () -> ()
    %cst_10 = arith.constant dense<0.000000e+00> : vector<2x8x8xf32>
    %34 = tpu.matmul %29, %31, %cst_10 {dimension_numbers = #tpu.dot_dimension_numbers<[2], [2], [1], [1], [0, 0, 0, 1, 1, 1], [0], [0]>} : vector<2x8x8xf32>, vector<2x8x8xf32>, vector<2x8x8xf32> -> vector<2x8x8xf32>
    "tpu.trace_stop"() : () -> ()
    %cst_11 = arith.constant 0.353553385 : f32
    %35 = vector.broadcast %cst_11 : f32 to vector<2x8x8xf32>
    %36 = arith.mulf %34, %35 : vector<2x8x8xf32>
    %cst_12 = arith.constant dense<0xFF800000> : vector<2x8xf32>
    %37 = vector.multi_reduction <maximumf>, %36, %cst_12 [2] : vector<2x8x8xf32> to vector<2x8xf32>
    %38 = vector.shape_cast %37 : vector<2x8xf32> to vector<2x8x1xf32>
    %39 = vector.broadcast %38 : vector<2x8x1xf32> to vector<2x8x8xf32>
    %40 = arith.subf %36, %39 : vector<2x8x8xf32>
    %41 = math.exp %40 : vector<2x8x8xf32>
    %cst_13 = arith.constant dense<0.000000e+00> : vector<2x8xf32>
    %42 = vector.multi_reduction <add>, %41, %cst_13 [2] : vector<2x8x8xf32> to vector<2x8xf32>
    %43 = vector.shape_cast %42 : vector<2x8xf32> to vector<2x8x1xf32>
    %44 = tpu.reciprocal %43 {approx = true} : vector<2x8x1xf32> -> vector<2x8x1xf32>
    %45 = vector.broadcast %44 : vector<2x8x1xf32> to vector<2x8x8xf32>
    %46 = arith.mulf %41, %45 : vector<2x8x8xf32>
    "tpu.trace_start"() <{level = 10 : i32, message = "bqk,bkd->bqd"}> : () -> ()
    %cst_14 = arith.constant dense<0.000000e+00> : vector<2x8x8xf32>
    %47 = tpu.matmul %46, %33, %cst_14 {dimension_numbers = #tpu.dot_dimension_numbers<[2], [1], [1], [2], [0, 0, 0, 1, 1, 2], [0], [0]>} : vector<2x8x8xf32>, vector<2x8x8xf32>, vector<2x8x8xf32> -> vector<2x8x8xf32>
    "tpu.trace_stop"() : () -> ()
    %48 = vector.shape_cast %47 : vector<2x8x8xf32> to vector<16x8xf32>
    %49 = vector.extract_strided_slice %6 {offsets = [0, 16], sizes = [16, 8], strides = [1, 1]} : vector<16x96xf32> to vector<16x8xf32>
    %50 = vector.shape_cast %49 : vector<16x8xf32> to vector<2x8x8xf32>
    %51 = vector.extract_strided_slice %6 {offsets = [0, 48], sizes = [16, 8], strides = [1, 1]} : vector<16x96xf32> to vector<16x8xf32>
    %52 = vector.shape_cast %51 : vector<16x8xf32> to vector<2x8x8xf32>
    %53 = vector.extract_strided_slice %6 {offsets = [0, 80], sizes = [16, 8], strides = [1, 1]} : vector<16x96xf32> to vector<16x8xf32>
    %54 = vector.shape_cast %53 : vector<16x8xf32> to vector<2x8x8xf32>
    "tpu.trace_start"() <{level = 10 : i32, message = "bqd,bkd->bqk"}> : () -> ()
    %cst_15 = arith.constant dense<0.000000e+00> : vector<2x8x8xf32>
    %55 = tpu.matmul %50, %52, %cst_15 {dimension_numbers = #tpu.dot_dimension_numbers<[2], [2], [1], [1], [0, 0, 0, 1, 1, 1], [0], [0]>} : vector<2x8x8xf32>, vector<2x8x8xf32>, vector<2x8x8xf32> -> vector<2x8x8xf32>
    "tpu.trace_stop"() : () -> ()
    %cst_16 = arith.constant 0.353553385 : f32
    %56 = vector.broadcast %cst_16 : f32 to vector<2x8x8xf32>
    %57 = arith.mulf %55, %56 : vector<2x8x8xf32>
    %cst_17 = arith.constant dense<0xFF800000> : vector<2x8xf32>
    %58 = vector.multi_reduction <maximumf>, %57, %cst_17 [2] : vector<2x8x8xf32> to vector<2x8xf32>
    %59 = vector.shape_cast %58 : vector<2x8xf32> to vector<2x8x1xf32>
    %60 = vector.broadcast %59 : vector<2x8x1xf32> to vector<2x8x8xf32>
    %61 = arith.subf %57, %60 : vector<2x8x8xf32>
    %62 = math.exp %61 : vector<2x8x8xf32>
    %cst_18 = arith.constant dense<0.000000e+00> : vector<2x8xf32>
    %63 = vector.multi_reduction <add>, %62, %cst_18 [2] : vector<2x8x8xf32> to vector<2x8xf32>
    %64 = vector.shape_cast %63 : vector<2x8xf32> to vector<2x8x1xf32>
    %65 = tpu.reciprocal %64 {approx = true} : vector<2x8x1xf32> -> vector<2x8x1xf32>
    %66 = vector.broadcast %65 : vector<2x8x1xf32> to vector<2x8x8xf32>
    %67 = arith.mulf %62, %66 : vector<2x8x8xf32>
    "tpu.trace_start"() <{level = 10 : i32, message = "bqk,bkd->bqd"}> : () -> ()
    %cst_19 = arith.constant dense<0.000000e+00> : vector<2x8x8xf32>
    %68 = tpu.matmul %67, %54, %cst_19 {dimension_numbers = #tpu.dot_dimension_numbers<[2], [1], [1], [2], [0, 0, 0, 1, 1, 2], [0], [0]>} : vector<2x8x8xf32>, vector<2x8x8xf32>, vector<2x8x8xf32> -> vector<2x8x8xf32>
    "tpu.trace_stop"() : () -> ()
    %69 = vector.shape_cast %68 : vector<2x8x8xf32> to vector<16x8xf32>
    %70 = vector.extract_strided_slice %6 {offsets = [0, 24], sizes = [16, 8], strides = [1, 1]} : vector<16x96xf32> to vector<16x8xf32>
    %71 = vector.shape_cast %70 : vector<16x8xf32> to vector<2x8x8xf32>
    %72 = vector.extract_strided_slice %6 {offsets = [0, 56], sizes = [16, 8], strides = [1, 1]} : vector<16x96xf32> to vector<16x8xf32>
    %73 = vector.shape_cast %72 : vector<16x8xf32> to vector<2x8x8xf32>
    %74 = vector.extract_strided_slice %6 {offsets = [0, 88], sizes = [16, 8], strides = [1, 1]} : vector<16x96xf32> to vector<16x8xf32>
    %75 = vector.shape_cast %74 : vector<16x8xf32> to vector<2x8x8xf32>
    "tpu.trace_start"() <{level = 10 : i32, message = "bqd,bkd->bqk"}> : () -> ()
    %cst_20 = arith.constant dense<0.000000e+00> : vector<2x8x8xf32>
    %76 = tpu.matmul %71, %73, %cst_20 {dimension_numbers = #tpu.dot_dimension_numbers<[2], [2], [1], [1], [0, 0, 0, 1, 1, 1], [0], [0]>} : vector<2x8x8xf32>, vector<2x8x8xf32>, vector<2x8x8xf32> -> vector<2x8x8xf32>
    "tpu.trace_stop"() : () -> ()
    %cst_21 = arith.constant 0.353553385 : f32
    %77 = vector.broadcast %cst_21 : f32 to vector<2x8x8xf32>
    %78 = arith.mulf %76, %77 : vector<2x8x8xf32>
    %cst_22 = arith.constant dense<0xFF800000> : vector<2x8xf32>
    %79 = vector.multi_reduction <maximumf>, %78, %cst_22 [2] : vector<2x8x8xf32> to vector<2x8xf32>
    %80 = vector.shape_cast %79 : vector<2x8xf32> to vector<2x8x1xf32>
    %81 = vector.broadcast %80 : vector<2x8x1xf32> to vector<2x8x8xf32>
    %82 = arith.subf %78, %81 : vector<2x8x8xf32>
    %83 = math.exp %82 : vector<2x8x8xf32>
    %cst_23 = arith.constant dense<0.000000e+00> : vector<2x8xf32>
    %84 = vector.multi_reduction <add>, %83, %cst_23 [2] : vector<2x8x8xf32> to vector<2x8xf32>
    %85 = vector.shape_cast %84 : vector<2x8xf32> to vector<2x8x1xf32>
    %86 = tpu.reciprocal %85 {approx = true} : vector<2x8x1xf32> -> vector<2x8x1xf32>
    %87 = vector.broadcast %86 : vector<2x8x1xf32> to vector<2x8x8xf32>
    %88 = arith.mulf %83, %87 : vector<2x8x8xf32>
    "tpu.trace_start"() <{level = 10 : i32, message = "bqk,bkd->bqd"}> : () -> ()
    %cst_24 = arith.constant dense<0.000000e+00> : vector<2x8x8xf32>
    %89 = tpu.matmul %88, %75, %cst_24 {dimension_numbers = #tpu.dot_dimension_numbers<[2], [1], [1], [2], [0, 0, 0, 1, 1, 2], [0], [0]>} : vector<2x8x8xf32>, vector<2x8x8xf32>, vector<2x8x8xf32> -> vector<2x8x8xf32>
    "tpu.trace_stop"() : () -> ()
    %90 = vector.shape_cast %89 : vector<2x8x8xf32> to vector<16x8xf32>
    %91 = tpu.concatenate %27, %48, %69, %90 in 1 : vector<16x8xf32>, vector<16x8xf32>, vector<16x8xf32>, vector<16x8xf32> -> vector<16x32xf32>
    %c32 = arith.constant 32 : index
    %c0_25 = arith.constant 0 : index
    %92 = vector.load %arg1[%c32, %c0_25] : memref<160x128xbf16, #tpu.memory_space<vmem>>, vector<32x32xbf16>
    %c1 = arith.constant 1 : index
    %c0_26 = arith.constant 0 : index
    %93 = vector.load %arg2[%c1, %c0_26] : memref<8x128xf32, #tpu.memory_space<vmem>>, vector<1x32xf32>
    %94 = arith.truncf %91 : vector<16x32xf32> to vector<16x32xbf16>
    %cst_27 = arith.constant dense<0.000000e+00> : vector<16x32xf32>
    %95 = tpu.matmul %94, %92, %cst_27 {dimension_numbers = #tpu.dot_dimension_numbers<[1], [0], [0], [1], [0, 0, 1, 1], [], []>} : vector<16x32xbf16>, vector<32x32xbf16>, vector<16x32xf32> -> vector<16x32xf32>
    %96 = vector.broadcast %93 : vector<1x32xf32> to vector<16x32xf32>
    %97 = arith.addf %95, %96 : vector<16x32xf32>
    %c2 = arith.constant 2 : index
    %c0_28 = arith.constant 0 : index
    %98 = vector.load %arg2[%c2, %c0_28] : memref<8x128xf32, #tpu.memory_space<vmem>>, vector<1x32xf32>
    %c3 = arith.constant 3 : index
    %c0_29 = arith.constant 0 : index
    %99 = vector.load %arg2[%c3, %c0_29] : memref<8x128xf32, #tpu.memory_space<vmem>>, vector<1x32xf32>
    %100 = arith.addf %97, %0 : vector<16x32xf32>
    %cst_30 = arith.constant dense<0.000000e+00> : vector<16xf32>
    %101 = vector.multi_reduction <add>, %100, %cst_30 [1] : vector<16x32xf32> to vector<16xf32>
    %102 = vector.shape_cast %101 : vector<16xf32> to vector<16x1xf32>
    %cst_31 = arith.constant 3.200000e+01 : f32
    %103 = vector.broadcast %cst_31 : f32 to vector<16x1xf32>
    %104 = arith.divf %102, %103 : vector<16x1xf32>
    %105 = vector.broadcast %104 : vector<16x1xf32> to vector<16x32xf32>
    %106 = arith.subf %100, %105 : vector<16x32xf32>
    %107 = vector.broadcast %104 : vector<16x1xf32> to vector<16x32xf32>
    %108 = arith.subf %100, %107 : vector<16x32xf32>
    %109 = arith.mulf %106, %108 : vector<16x32xf32>
    %cst_32 = arith.constant dense<0.000000e+00> : vector<16xf32>
    %110 = vector.multi_reduction <add>, %109, %cst_32 [1] : vector<16x32xf32> to vector<16xf32>
    %111 = vector.shape_cast %110 : vector<16xf32> to vector<16x1xf32>
    %cst_33 = arith.constant 3.200000e+01 : f32
    %112 = vector.broadcast %cst_33 : f32 to vector<16x1xf32>
    %113 = arith.divf %111, %112 : vector<16x1xf32>
    %114 = vector.broadcast %104 : vector<16x1xf32> to vector<16x32xf32>
    %115 = arith.subf %100, %114 : vector<16x32xf32>
    %cst_34 = arith.constant 9.99999974E-6 : f32
    %116 = vector.broadcast %cst_34 : f32 to vector<16x1xf32>
    %117 = arith.addf %113, %116 : vector<16x1xf32>
    %118 = math.rsqrt %117 : vector<16x1xf32>
    %119 = vector.broadcast %118 : vector<16x1xf32> to vector<16x32xf32>
    %120 = arith.mulf %115, %119 : vector<16x32xf32>
    %121 = vector.broadcast %98 : vector<1x32xf32> to vector<16x32xf32>
    %122 = arith.mulf %120, %121 : vector<16x32xf32>
    %123 = vector.broadcast %99 : vector<1x32xf32> to vector<16x32xf32>
    %124 = arith.addf %122, %123 : vector<16x32xf32>
    %c64 = arith.constant 64 : index
    %c0_35 = arith.constant 0 : index
    %125 = vector.load %arg1[%c64, %c0_35] : memref<160x128xbf16, #tpu.memory_space<vmem>>, vector<32x64xbf16>
    %c4 = arith.constant 4 : index
    %c0_36 = arith.constant 0 : index
    %126 = vector.load %arg2[%c4, %c0_36] : memref<8x128xf32, #tpu.memory_space<vmem>>, vector<1x64xf32>
    %127 = arith.truncf %124 : vector<16x32xf32> to vector<16x32xbf16>
    %cst_37 = arith.constant dense<0.000000e+00> : vector<16x64xf32>
    %128 = tpu.matmul %127, %125, %cst_37 {dimension_numbers = #tpu.dot_dimension_numbers<[1], [0], [0], [1], [0, 0, 1, 1], [], []>} : vector<16x32xbf16>, vector<32x64xbf16>, vector<16x64xf32> -> vector<16x64xf32>
    %129 = vector.broadcast %126 : vector<1x64xf32> to vector<16x64xf32>
    %130 = arith.addf %128, %129 : vector<16x64xf32>
    %c5 = arith.constant 5 : index
    %c0_38 = arith.constant 0 : index
    %131 = vector.load %arg2[%c5, %c0_38] : memref<8x128xf32, #tpu.memory_space<vmem>>, vector<1x64xf32>
    %c6 = arith.constant 6 : index
    %c0_39 = arith.constant 0 : index
    %132 = vector.load %arg2[%c6, %c0_39] : memref<8x128xf32, #tpu.memory_space<vmem>>, vector<1x64xf32>
    %cst_40 = arith.constant dense<0.000000e+00> : vector<16xf32>
    %133 = vector.multi_reduction <add>, %130, %cst_40 [1] : vector<16x64xf32> to vector<16xf32>
    %134 = vector.shape_cast %133 : vector<16xf32> to vector<16x1xf32>
    %cst_41 = arith.constant 6.400000e+01 : f32
    %135 = vector.broadcast %cst_41 : f32 to vector<16x1xf32>
    %136 = arith.divf %134, %135 : vector<16x1xf32>
    %137 = vector.broadcast %136 : vector<16x1xf32> to vector<16x64xf32>
    %138 = arith.subf %130, %137 : vector<16x64xf32>
    %139 = vector.broadcast %136 : vector<16x1xf32> to vector<16x64xf32>
    %140 = arith.subf %130, %139 : vector<16x64xf32>
    %141 = arith.mulf %138, %140 : vector<16x64xf32>
    %cst_42 = arith.constant dense<0.000000e+00> : vector<16xf32>
    %142 = vector.multi_reduction <add>, %141, %cst_42 [1] : vector<16x64xf32> to vector<16xf32>
    %143 = vector.shape_cast %142 : vector<16xf32> to vector<16x1xf32>
    %cst_43 = arith.constant 6.400000e+01 : f32
    %144 = vector.broadcast %cst_43 : f32 to vector<16x1xf32>
    %145 = arith.divf %143, %144 : vector<16x1xf32>
    %146 = vector.broadcast %136 : vector<16x1xf32> to vector<16x64xf32>
    %147 = arith.subf %130, %146 : vector<16x64xf32>
    %cst_44 = arith.constant 9.99999974E-6 : f32
    %148 = vector.broadcast %cst_44 : f32 to vector<16x1xf32>
    %149 = arith.addf %145, %148 : vector<16x1xf32>
    %150 = math.rsqrt %149 : vector<16x1xf32>
    %151 = vector.broadcast %150 : vector<16x1xf32> to vector<16x64xf32>
    %152 = arith.mulf %147, %151 : vector<16x64xf32>
    %153 = vector.broadcast %131 : vector<1x64xf32> to vector<16x64xf32>
    %154 = arith.mulf %152, %153 : vector<16x64xf32>
    %155 = vector.broadcast %132 : vector<1x64xf32> to vector<16x64xf32>
    %156 = arith.addf %154, %155 : vector<16x64xf32>
    %cst_45 = arith.constant 0.000000e+00 : f32
    %157 = vector.broadcast %cst_45 : f32 to vector<16x64xf32>
    %158 = arith.maximumf %156, %157 : vector<16x64xf32>
    %c96 = arith.constant 96 : index
    %c0_46 = arith.constant 0 : index
    %159 = vector.load %arg1[%c96, %c0_46] : memref<160x128xbf16, #tpu.memory_space<vmem>>, vector<64x32xbf16>
    %c7 = arith.constant 7 : index
    %c0_47 = arith.constant 0 : index
    %160 = vector.load %arg2[%c7, %c0_47] : memref<8x128xf32, #tpu.memory_space<vmem>>, vector<1x32xf32>
    %161 = arith.truncf %158 : vector<16x64xf32> to vector<16x64xbf16>
    %cst_48 = arith.constant dense<0.000000e+00> : vector<16x32xf32>
    %162 = tpu.matmul %161, %159, %cst_48 {dimension_numbers = #tpu.dot_dimension_numbers<[1], [0], [0], [1], [0, 0, 1, 1], [], []>} : vector<16x64xbf16>, vector<64x32xbf16>, vector<16x32xf32> -> vector<16x32xf32>
    %163 = vector.broadcast %160 : vector<1x32xf32> to vector<16x32xf32>
    %164 = arith.addf %162, %163 : vector<16x32xf32>
    %165 = arith.addf %164, %124 : vector<16x32xf32>
    %166 = vector.shape_cast %165 : vector<16x32xf32> to vector<2x8x32xf32>
    %c0_49 = arith.constant 0 : index
    %c0_50 = arith.constant 0 : index
    %c0_51 = arith.constant 0 : index
    %167 = vector.load %arg3[%c0_49, %c0_50, %c0_51] : memref<2x8x32xf32, #tpu.memory_space<vmem>>, vector<2x8x32xf32>
    tpu.vector_store %arg3[%c0_49, %c0_50, %c0_51], %166 {strides = array<i32>} : memref<2x8x32xf32, #tpu.memory_space<vmem>>, vector<2x8x32xf32>,
    return
  }
}

</mosaic_0001>

<llo_original>
// kernel: transformer_layer.1
$region0: #{transformer_layer.1}
  #allocation0 [shape = 'u32[]', space=smem, size = 0x4, offset = 0x4, fixed_abs, tag = 'smem constant byte address 0x4 - core index']
  #allocation1 [shape = 'u32[144,128]{1,0:T(1,128)}', space=vmem, size = 0x12000, scoped, tag = 'internal scratch']
  %s0 = inlined_call_operand.hbm [shape: f32[16,32], index: 0, kind: input, shape index: {}]
  %s1 = inlined_call_operand.hbm [shape: bf16[160,128], index: 1, kind: input, shape index: {}]
  %s2 = inlined_call_operand.vmem [shape: f32[8,128], index: 2, kind: input, shape index: {}]
  %s3 = inlined_call_operand.hbm [shape: f32[2,8,32], index: 3, kind: output, shape index: {}]
  %s4 = sld [smem:[#allocation0]]
  $region30: #{transformer_layer.1} parent=0
    _
  %s6 = ssub.s32 1, %s4
  %s7 = scalar_select 0, %s6, %s4
  $region1: #{transformer_layer.1} parent=0
    #allocation2 [shape = 'u8[8192]{0}', space=vmem, size = 0x2000, scoped, tag = 'input window, operand 0, single buffered']
    #allocation3 [shape = 's32[1]{0}', space=sflag, size = 0x4, scoped, tag = 'scoped memory for transformer_layer.1']
    #allocation4 [shape = 's32[1]{0}', space=sflag, size = 0x4, scoped, tag = 'scoped memory for transformer_layer.1']
    #allocation5 [shape = 'u8[40960]{0}', space=vmem, size = 0xa000, scoped, tag = 'input window, operand 1, single buffered']
    #allocation6 [shape = 's32[1]{0}', space=sflag, size = 0x4, scoped, tag = 'scoped memory for transformer_layer.1']
    #allocation7 [shape = 'u8[8192]{0}', space=vmem, size = 0x2000, scoped, tag = 'output window, operand 0, single buffered']
    %8 = vsyncpa [#allocation3], 0
    %9 = vsyncpa [#allocation6], 0
    %10 = vsyncpa [#allocation4], 0
    // Predicated region
    $region2: #{transformer_layer.1} parent=1 // pred_check
      _
    $region3: #{transformer_layer.1} parent=1 // pred_check_branch
      %12 = sbr.rel (0) target = $region5
    $region4: #{transformer_layer.1} parent=1 // pred_region
      %s14 = ssub.s32 256, 256
      %15 = vsyncadd [#allocation3], %s14
      %s16 = sshll.u32 [#allocation2], 4
      %s17 = int_to_ptr.vmem [resolvable:$true] %s16
      %22 = dma.hbm_to_vmem [thread:$0]  %s0, 256, %s17, [#allocation3], 128, 128, 8
    $region5: #{transformer_layer.1} parent=1 // pred_fallthru
      _
    // Predicated region
    $region6: #{transformer_layer.1} parent=1 // pred_check
      _
    $region7: #{transformer_layer.1} parent=1 // pred_check_branch
      %24 = sbr.rel (0) target = $region9
    $region8: #{transformer_layer.1} parent=1 // pred_region
      %s26 = ssub.s32 1280, 1280
      %27 = vsyncadd [#allocation6], %s26
      %s28 = sshll.u32 [#allocation5], 4
      %s29 = int_to_ptr.vmem [resolvable:$true] %s28
      %34 = dma.hbm_to_vmem [thread:$0]  %s1, 1280, %s29, [#allocation6], 64, 64, 4
    $region9: #{transformer_layer.1} parent=1 // pred_fallthru
      _
    // Predicated region
    $region10: #{transformer_layer.1} parent=1 // pred_check
      _
    $region11: #{transformer_layer.1} parent=1 // pred_check_branch
      %36 = sbr.rel (0) target = $region13
    $region12: #{transformer_layer.1} parent=1 // pred_region
      _
    $region13: #{transformer_layer.1} parent=1 // pred_fallthru
      _
    // Predicated region
    $region14: #{transformer_layer.1} parent=1 // pred_check
      _
    $region15: #{transformer_layer.1} parent=1 // pred_check_branch
      %38 = sbr.rel (0) target = $region17
    $region16: #{transformer_layer.1} parent=1 // pred_region
      %39 = dma.done [#allocation3], 256
    $region17: #{transformer_layer.1} parent=1 // pred_fallthru
      _
    // Predicated region
    $region18: #{transformer_layer.1} parent=1 // pred_check
      _
    $region19: #{transformer_layer.1} parent=1 // pred_check_branch
      %41 = sbr.rel (0) target = $region21
    $region20: #{transformer_layer.1} parent=1 // pred_region
      %42 = dma.done [#allocation6], 1280
    $region21: #{transformer_layer.1} parent=1 // pred_fallthru
      _
    %v44 = vld [vmem:[#allocation2] sm:$0xff]
    %v45 = vld [vmem:[#allocation2 + $0x8] sm:$0xff]
    %v46 = vpack.c.bf16 %v45, %v44
    %v47 = vld [vmem:[#allocation5] sm:$0xf]
    %v48 = vld [vmem:[#allocation5 + $0x4] sm:$0xf]
    %v49 = vld [vmem:[#allocation5 + $0x8] sm:$0xf]
    %v50 = vld [vmem:[#allocation5 + $0xc] sm:$0xf]
    %v51 = vld [vmem:[%s2] sm:$0x1]
    %v52 = vlaneseq
    %v53 = vshrl.u32 %v52, 7
    %v54 = vsub.s32 0, %v53
    %v55 = vrot.slane %v51, %v54
    %v60 = vunpack.c.l.b16 %v47
    %v61 = vunpack.c.l.b16 %v48
    %v62 = vunpack.c.l.b16 %v49
    %v63 = vunpack.c.l.b16 %v50
    %v64 = vpack.c.b16 %v61, %v60
    %v65 = vpack.c.b16 %v63, %v62
    %vm68 = vcmask 261120
    %v70 = vsel %vm68, %v46, 0
    %72 = vmatprep.subr.bf16.mxu0 0
    %73 = vmatpush1.bf16.msra.mxu0 %v64
    %74 = vmatprep.subr.bf16.mxu0 0
    %75 = vmatpush1.bf16.msra.mxu0 %v65
    %76 = vmatprep.subr.bf16.mxu0 0
    %77 = vmatpush1.bf16.msra.mxu0 0
    %78 = vmatprep.subr.bf16.mxu0 0
    %79 = vmatpush1.bf16.msra.mxu0 0
    %80 = vmatprep.subr.bf16.mxu0 0
    %81 = vmatpush1.bf16.msra.mxu0 0
    %82 = vmatprep.subr.bf16.mxu0 0
    %83 = vmatpush1.bf16.msra.mxu0 0
    %84 = vmatprep.subr.bf16.mxu0 0
    %85 = vmatpush1.bf16.msra.mxu0 0
    %86 = vmatprep.subr.bf16.mxu0 0
    %87 = vmatpush1.bf16.msra.mxu0 0
    %88 = vmatprep.subr.bf16.mxu0 0
    %89 = vmatpush1.bf16.msra.mxu0 0
    %90 = vmatprep.subr.bf16.mxu0 0
    %91 = vmatpush1.bf16.msra.mxu0 0
    %92 = vmatprep.subr.bf16.mxu0 0
    %93 = vmatpush1.bf16.msra.mxu0 0
    %94 = vmatprep.subr.bf16.mxu0 0
    %95 = vmatpush1.bf16.msra.mxu0 0
    %96 = vmatprep.subr.bf16.mxu0 0
    %97 = vmatpush1.bf16.msra.mxu0 0
    %98 = vmatprep.subr.bf16.mxu0 0
    %99 = vmatpush1.bf16.msra.mxu0 0
    %100 = vmatprep.subr.bf16.mxu0 0
    %101 = vmatpush1.bf16.msra.mxu0 0
    %102 = vmatprep.subr.bf16.mxu0 0
    %103 = vmatpush1.bf16.msra.mxu0 0
    %104 = vmatprep.mubr.bf16.mxu0 0
    %105 = vmatmul.mubr.bf16.gmra.mrb[0].mxu0 %v70
    %v106 = vpop.f32.mrb[0].mxu0
    %v107 = vadd.f32 %v55, %v106
    %v108 = vpop.f32.mrb[0].mxu0
    %v109 = vpop.f32.mrb[0].mxu0
    %v110 = vadd.f32 %v55, %v109
    %v111 = vpop.f32.mrb[0].mxu0
    %112 = vdwg.mxu0
    %114 = vrot.lane.b32.xlu0 %v107, 96
    %v115 = vpop.permute.xlu0 %114
    %vm116 = vcmask 64512
    %v117 = vsel %vm116, %v107, 0
    %v119 = vsel %vm116, %v115, 0
    %121 = vmatprep.subr.mxu0 0.0
    %122 = vmatpush1.xpose.msra.mxu0 %v119
    %123 = vmatprep.subr.mxu0 0.0
    %124 = vmatpush1.xpose.msra.mxu0 0.0
    %125 = vmatprep.subr.mxu0 0.0
    %126 = vmatpush1.xpose.msra.mxu0 0.0
    %127 = vmatprep.subr.mxu0 0.0
    %128 = vmatpush1.xpose.msra.mxu0 0.0
    %129 = vmatprep.subr.mxu0 0.0
    %130 = vmatpush1.xpose.msra.mxu0 0.0
    %131 = vmatprep.subr.mxu0 0.0
    %132 = vmatpush1.xpose.msra.mxu0 0.0
    %133 = vmatprep.subr.mxu0 0.0
    %134 = vmatpush1.xpose.msra.mxu0 0.0
    %135 = vmatprep.subr.mxu0 0.0
    %136 = vmatpush1.xpose.msra.mxu0 0.0
    %137 = vmatprep.subr.mxu0 0.0
    %138 = vmatpush1.xpose.msra.mxu0 0.0
    %139 = vmatprep.subr.mxu0 0.0
    %140 = vmatpush1.xpose.msra.mxu0 0.0
    %141 = vmatprep.subr.mxu0 0.0
    %142 = vmatpush1.xpose.msra.mxu0 0.0
    %143 = vmatprep.subr.mxu0 0.0
    %144 = vmatpush1.xpose.msra.mxu0 0.0
    %145 = vmatprep.subr.mxu0 0.0
    %146 = vmatpush1.xpose.msra.mxu0 0.0
    %147 = vmatprep.subr.mxu0 0.0
    %148 = vmatpush1.xpose.msra.mxu0 0.0
    %149 = vmatprep.subr.mxu0 0.0
    %150 = vmatpush1.xpose.msra.mxu0 0.0
    %151 = vmatprep.subr.mxu0 0.0
    %152 = vmatpush1.xpose.msra.mxu0 0.0
    %153 = vmatprep.subr.mxu0 0.0
    %154 = vmatpush1.xpose.msra.mxu0 0.0
    %155 = vmatprep.subr.mxu0 0.0
    %156 = vmatpush1.xpose.msra.mxu0 0.0
    %157 = vmatprep.subr.mxu0 0.0
    %158 = vmatpush1.xpose.msra.mxu0 0.0
    %159 = vmatprep.subr.mxu0 0.0
    %160 = vmatpush1.xpose.msra.mxu0 0.0
    %161 = vmatprep.subr.mxu0 0.0
    %162 = vmatpush1.xpose.msra.mxu0 0.0
    %163 = vmatprep.subr.mxu0 0.0
    %164 = vmatpush1.xpose.msra.mxu0 0.0
    %165 = vmatprep.subr.mxu0 0.0
    %166 = vmatpush1.xpose.msra.mxu0 0.0
    %167 = vmatprep.subr.mxu0 0.0
    %168 = vmatpush1.xpose.msra.mxu0 0.0
    %169 = vmatprep.subr.mxu0 0.0
    %170 = vmatpush1.xpose.msra.mxu0 0.0
    %171 = vmatprep.subr.mxu0 0.0
    %172 = vmatpush1.xpose.msra.mxu0 0.0
    %173 = vmatprep.subr.mxu0 0.0
    %174 = vmatpush1.xpose.msra.mxu0 0.0
    %175 = vmatprep.subr.mxu0 0.0
    %176 = vmatpush1.xpose.msra.mxu0 0.0
    %177 = vmatprep.subr.mxu0 0.0
    %178 = vmatpush1.xpose.msra.mxu0 0.0
    %179 = vmatprep.subr.mxu0 0.0
    %180 = vmatpush1.xpose.msra.mxu0 0.0
    %181 = vmatprep.subr.mxu0 0.0
    %182 = vmatpush1.xpose.msra.mxu0 0.0
    %183 = vmatprep.subr.mxu0 0.0
    %184 = vmatpush1.xpose.msra.mxu0 0.0
    %185 = vmatprep.mubr.f32.mxu0 0.0
    %186 = vmatmul.mubr.f32.gmra.mrb[0].mxu0 %v117
    %v187 = vpop.f32.mrb[0].mxu0
    %v188 = vadd.f32 0.0, %v187
    %v189 = vpop.f32.mrb[0].mxu0
    %190 = vdwg.mxu0
    %192 = vrot.lane.b32.xlu0 %v110, 96
    %v193 = vpop.permute.xlu0 %192
    %v194 = vsel %vm116, %v110, 0
    %v196 = vsel %vm116, %v193, 0
    %198 = vmatprep.subr.mxu0 0.0
    %199 = vmatpush1.xpose.msra.mxu0 %v196
    %200 = vmatprep.subr.mxu0 0.0
    %201 = vmatpush1.xpose.msra.mxu0 0.0
    %202 = vmatprep.subr.mxu0 0.0
    %203 = vmatpush1.xpose.msra.mxu0 0.0
    %204 = vmatprep.subr.mxu0 0.0
    %205 = vmatpush1.xpose.msra.mxu0 0.0
    %206 = vmatprep.subr.mxu0 0.0
    %207 = vmatpush1.xpose.msra.mxu0 0.0
    %208 = vmatprep.subr.mxu0 0.0
    %209 = vmatpush1.xpose.msra.mxu0 0.0
    %210 = vmatprep.subr.mxu0 0.0
    %211 = vmatpush1.xpose.msra.mxu0 0.0
    %212 = vmatprep.subr.mxu0 0.0
    %213 = vmatpush1.xpose.msra.mxu0 0.0
    %214 = vmatprep.subr.mxu0 0.0
    %215 = vmatpush1.xpose.msra.mxu0 0.0
    %216 = vmatprep.subr.mxu0 0.0
    %217 = vmatpush1.xpose.msra.mxu0 0.0
    %218 = vmatprep.subr.mxu0 0.0
    %219 = vmatpush1.xpose.msra.mxu0 0.0
    %220 = vmatprep.subr.mxu0 0.0
    %221 = vmatpush1.xpose.msra.mxu0 0.0
    %222 = vmatprep.subr.mxu0 0.0
    %223 = vmatpush1.xpose.msra.mxu0 0.0
    %224 = vmatprep.subr.mxu0 0.0
    %225 = vmatpush1.xpose.msra.mxu0 0.0
    %226 = vmatprep.subr.mxu0 0.0
    %227 = vmatpush1.xpose.msra.mxu0 0.0
    %228 = vmatprep.subr.mxu0 0.0
    %229 = vmatpush1.xpose.msra.mxu0 0.0
    %230 = vmatprep.subr.mxu0 0.0
    %231 = vmatpush1.xpose.msra.mxu0 0.0
    %232 = vmatprep.subr.mxu0 0.0
    %233 = vmatpush1.xpose.msra.mxu0 0.0
    %234 = vmatprep.subr.mxu0 0.0
    %235 = vmatpush1.xpose.msra.mxu0 0.0
    %236 = vmatprep.subr.mxu0 0.0
    %237 = vmatpush1.xpose.msra.mxu0 0.0
    %238 = vmatprep.subr.mxu0 0.0
    %239 = vmatpush1.xpose.msra.mxu0 0.0
    %240 = vmatprep.subr.mxu0 0.0
    %241 = vmatpush1.xpose.msra.mxu0 0.0
    %242 = vmatprep.subr.mxu0 0.0
    %243 = vmatpush1.xpose.msra.mxu0 0.0
    %244 = vmatprep.subr.mxu0 0.0
    %245 = vmatpush1.xpose.msra.mxu0 0.0
    %246 = vmatprep.subr.mxu0 0.0
    %247 = vmatpush1.xpose.msra.mxu0 0.0
    %248 = vmatprep.subr.mxu0 0.0
    %249 = vmatpush1.xpose.msra.mxu0 0.0
    %250 = vmatprep.subr.mxu0 0.0
    %251 = vmatpush1.xpose.msra.mxu0 0.0
    %252 = vmatprep.subr.mxu0 0.0
    %253 = vmatpush1.xpose.msra.mxu0 0.0
    %254 = vmatprep.subr.mxu0 0.0
    %255 = vmatpush1.xpose.msra.mxu0 0.0
    %256 = vmatprep.subr.mxu0 0.0
    %257 = vmatpush1.xpose.msra.mxu0 0.0
    %258 = vmatprep.subr.mxu0 0.0
    %259 = vmatpush1.xpose.msra.mxu0 0.0
    %260 = vmatprep.subr.mxu0 0.0
    %261 = vmatpush1.xpose.msra.mxu0 0.0
    %262 = vmatprep.mubr.f32.mxu0 0.0
    %263 = vmatmul.mubr.f32.gmra.mrb[0].mxu0 %v194
    %v264 = vpop.f32.mrb[0].mxu0
    %v265 = vadd.f32 0.0, %v264
    %v266 = vpop.f32.mrb[0].mxu0
    %267 = vdwg.mxu0
    %v268 = vmul.f32 %v188, 0.35355338
    %v269 = vmul.f32 %v265, 0.35355338
    %v270 = vsel %vm116, %v268, -inf
    %271 = vmax.xlane.f32.xlu0 %v270
    %v272 = vpop.xlane.xlu0 %271
    %v273 = vsel %vm116, %v269, -inf
    %274 = vmax.xlane.f32.xlu0 %v273
    %v275 = vpop.xlane.xlu0 %274
    %v276 = vsub.f32 %v268, %v272
    %v277 = vsub.f32 %v269, %v275
    %v278 = vmul.f32 %v276, 1.442695
    %v279 = vpow.pop %v278
    %v280 = vmul.f32 %v277, 1.442695
    %v281 = vpow.pop %v280
    %v282 = vsel %vm116, %v279, 0.0
    %283 = vadd.xlane.f32.xlu0 %v282
    %v284 = vpop.xlane.xlu0 %283
    %v285 = vsel %vm116, %v281, 0.0
    %286 = vadd.xlane.f32.xlu0 %v285
    %v287 = vpop.xlane.xlu0 %286
    %v288 = vrcp.pop %v284
    %v289 = vrcp.pop %v287
    %v290 = vmul.f32 %v279, %v288
    %v291 = vmul.f32 %v281, %v289
    %292 = vrot.lane.b32.xlu0 %v107, 64
    %v293 = vpop.permute.xlu0 %292
    %v296 = vsel %vm116, %v290, 0
    %298 = vmatprep.subr.mxu0 0.0
    %299 = vmatpush1.msra.mxu0 %v293
    %300 = vmatprep.subr.mxu0 0.0
    %301 = vmatpush1.msra.mxu0 0.0
    %302 = vmatprep.subr.mxu0 0.0
    %303 = vmatpush1.msra.mxu0 0.0
    %304 = vmatprep.subr.mxu0 0.0
    %305 = vmatpush1.msra.mxu0 0.0
    %306 = vmatprep.subr.mxu0 0.0
    %307 = vmatpush1.msra.mxu0 0.0
    %308 = vmatprep.subr.mxu0 0.0
    %309 = vmatpush1.msra.mxu0 0.0
    %310 = vmatprep.subr.mxu0 0.0
    %311 = vmatpush1.msra.mxu0 0.0
    %312 = vmatprep.subr.mxu0 0.0
    %313 = vmatpush1.msra.mxu0 0.0
    %314 = vmatprep.subr.mxu0 0.0
    %315 = vmatpush1.msra.mxu0 0.0
    %316 = vmatprep.subr.mxu0 0.0
    %317 = vmatpush1.msra.mxu0 0.0
    %318 = vmatprep.subr.mxu0 0.0
    %319 = vmatpush1.msra.mxu0 0.0
    %320 = vmatprep.subr.mxu0 0.0
    %321 = vmatpush1.msra.mxu0 0.0
    %322 = vmatprep.subr.mxu0 0.0
    %323 = vmatpush1.msra.mxu0 0.0
    %324 = vmatprep.subr.mxu0 0.0
    %325 = vmatpush1.msra.mxu0 0.0
    %326 = vmatprep.subr.mxu0 0.0
    %327 = vmatpush1.msra.mxu0 0.0
    %328 = vmatprep.subr.mxu0 0.0
    %329 = vmatpush1.msra.mxu0 0.0
    %330 = vmatprep.subr.mxu0 0.0
    %331 = vmatpush1.msra.mxu0 0.0
    %332 = vmatprep.subr.mxu0 0.0
    %333 = vmatpush1.msra.mxu0 0.0
    %334 = vmatprep.subr.mxu0 0.0
    %335 = vmatpush1.msra.mxu0 0.0
    %336 = vmatprep.subr.mxu0 0.0
    %337 = vmatpush1.msra.mxu0 0.0
    %338 = vmatprep.subr.mxu0 0.0
    %339 = vmatpush1.msra.mxu0 0.0
    %340 = vmatprep.subr.mxu0 0.0
    %341 = vmatpush1.msra.mxu0 0.0
    %342 = vmatprep.subr.mxu0 0.0
    %343 = vmatpush1.msra.mxu0 0.0
    %344 = vmatprep.subr.mxu0 0.0
    %345 = vmatpush1.msra.mxu0 0.0
    %346 = vmatprep.subr.mxu0 0.0
    %347 = vmatpush1.msra.mxu0 0.0
    %348 = vmatprep.subr.mxu0 0.0
    %349 = vmatpush1.msra.mxu0 0.0
    %350 = vmatprep.subr.mxu0 0.0
    %351 = vmatpush1.msra.mxu0 0.0
    %352 = vmatprep.subr.mxu0 0.0
    %353 = vmatpush1.msra.mxu0 0.0
    %354 = vmatprep.subr.mxu0 0.0
    %355 = vmatpush1.msra.mxu0 0.0
    %356 = vmatprep.subr.mxu0 0.0
    %357 = vmatpush1.msra.mxu0 0.0
    %358 = vmatprep.subr.mxu0 0.0
    %359 = vmatpush1.msra.mxu0 0.0
    %360 = vmatprep.subr.mxu0 0.0
    %361 = vmatpush1.msra.mxu0 0.0
    %362 = vmatprep.mubr.f32.mxu0 0.0
    %363 = vmatmul.mubr.f32.gmra.mrb[0].mxu0 %v296
    %v364 = vpop.f32.mrb[0].mxu0
    %v365 = vadd.f32 0.0, %v364
    %v366 = vpop.f32.mrb[0].mxu0
    %367 = vdwg.mxu0
    %368 = vrot.lane.b32.xlu0 %v110, 64
    %v369 = vpop.permute.xlu0 %368
    %v372 = vsel %vm116, %v291, 0
    %374 = vmatprep.subr.mxu0 0.0
    %375 = vmatpush1.msra.mxu0 %v369
    %376 = vmatprep.subr.mxu0 0.0
    %377 = vmatpush1.msra.mxu0 0.0
    %378 = vmatprep.subr.mxu0 0.0
    %379 = vmatpush1.msra.mxu0 0.0
    %380 = vmatprep.subr.mxu0 0.0
    %381 = vmatpush1.msra.mxu0 0.0
    %382 = vmatprep.subr.mxu0 0.0
    %383 = vmatpush1.msra.mxu0 0.0
    %384 = vmatprep.subr.mxu0 0.0
    %385 = vmatpush1.msra.mxu0 0.0
    %386 = vmatprep.subr.mxu0 0.0
    %387 = vmatpush1.msra.mxu0 0.0
    %388 = vmatprep.subr.mxu0 0.0
    %389 = vmatpush1.msra.mxu0 0.0
    %390 = vmatprep.subr.mxu0 0.0
    %391 = vmatpush1.msra.mxu0 0.0
    %392 = vmatprep.subr.mxu0 0.0
    %393 = vmatpush1.msra.mxu0 0.0
    %394 = vmatprep.subr.mxu0 0.0
    %395 = vmatpush1.msra.mxu0 0.0
    %396 = vmatprep.subr.mxu0 0.0
    %397 = vmatpush1.msra.mxu0 0.0
    %398 = vmatprep.subr.mxu0 0.0
    %399 = vmatpush1.msra.mxu0 0.0
    %400 = vmatprep.subr.mxu0 0.0
    %401 = vmatpush1.msra.mxu0 0.0
    %402 = vmatprep.subr.mxu0 0.0
    %403 = vmatpush1.msra.mxu0 0.0
    %404 = vmatprep.subr.mxu0 0.0
    %405 = vmatpush1.msra.mxu0 0.0
    %406 = vmatprep.subr.mxu0 0.0
    %407 = vmatpush1.msra.mxu0 0.0
    %408 = vmatprep.subr.mxu0 0.0
    %409 = vmatpush1.msra.mxu0 0.0
    %410 = vmatprep.subr.mxu0 0.0
    %411 = vmatpush1.msra.mxu0 0.0
    %412 = vmatprep.subr.mxu0 0.0
    %413 = vmatpush1.msra.mxu0 0.0
    %414 = vmatprep.subr.mxu0 0.0
    %415 = vmatpush1.msra.mxu0 0.0
    %416 = vmatprep.subr.mxu0 0.0
    %417 = vmatpush1.msra.mxu0 0.0
    %418 = vmatprep.subr.mxu0 0.0
    %419 = vmatpush1.msra.mxu0 0.0
    %420 = vmatprep.subr.mxu0 0.0
    %421 = vmatpush1.msra.mxu0 0.0
    %422 = vmatprep.subr.mxu0 0.0
    %423 = vmatpush1.msra.mxu0 0.0
    %424 = vmatprep.subr.mxu0 0.0
    %425 = vmatpush1.msra.mxu0 0.0
    %426 = vmatprep.subr.mxu0 0.0
    %427 = vmatpush1.msra.mxu0 0.0
    %428 = vmatprep.subr.mxu0 0.0
    %429 = vmatpush1.msra.mxu0 0.0
    %430 = vmatprep.subr.mxu0 0.0
    %431 = vmatpush1.msra.mxu0 0.0
    %432 = vmatprep.subr.mxu0 0.0
    %433 = vmatpush1.msra.mxu0 0.0
    %434 = vmatprep.subr.mxu0 0.0
    %435 = vmatpush1.msra.mxu0 0.0
    %436 = vmatprep.subr.mxu0 0.0
    %437 = vmatpush1.msra.mxu0 0.0
    %438 = vmatprep.mubr.f32.mxu0 0.0
    %439 = vmatmul.mubr.f32.gmra.mrb[0].mxu0 %v372
    %v440 = vpop.f32.mrb[0].mxu0
    %v441 = vadd.f32 0.0, %v440
    %v442 = vpop.f32.mrb[0].mxu0
    %443 = vdwg.mxu0
    %444 = vrot.lane.b32.xlu0 %v107, 120
    %v445 = vpop.permute.xlu0 %444
    %446 = vrot.lane.b32.xlu0 %v107, 88
    %v447 = vpop.permute.xlu0 %446
    %v448 = vsel %vm116, %v445, 0
    %v450 = vsel %vm116, %v447, 0
    %452 = vmatprep.subr.mxu0 0.0
    %453 = vmatpush1.xpose.msra.mxu0 %v450
    %454 = vmatprep.subr.mxu0 0.0
    %455 = vmatpush1.xpose.msra.mxu0 0.0
    %456 = vmatprep.subr.mxu0 0.0
    %457 = vmatpush1.xpose.msra.mxu0 0.0
    %458 = vmatprep.subr.mxu0 0.0
    %459 = vmatpush1.xpose.msra.mxu0 0.0
    %460 = vmatprep.subr.mxu0 0.0
    %461 = vmatpush1.xpose.msra.mxu0 0.0
    %462 = vmatprep.subr.mxu0 0.0
    %463 = vmatpush1.xpose.msra.mxu0 0.0
    %464 = vmatprep.subr.mxu0 0.0
    %465 = vmatpush1.xpose.msra.mxu0 0.0
    %466 = vmatprep.subr.mxu0 0.0
    %467 = vmatpush1.xpose.msra.mxu0 0.0
    %468 = vmatprep.subr.mxu0 0.0
    %469 = vmatpush1.xpose.msra.mxu0 0.0
    %470 = vmatprep.subr.mxu0 0.0
    %471 = vmatpush1.xpose.msra.mxu0 0.0
    %472 = vmatprep.subr.mxu0 0.0
    %473 = vmatpush1.xpose.msra.mxu0 0.0
    %474 = vmatprep.subr.mxu0 0.0
    %475 = vmatpush1.xpose.msra.mxu0 0.0
    %476 = vmatprep.subr.mxu0 0.0
    %477 = vmatpush1.xpose.msra.mxu0 0.0
    %478 = vmatprep.subr.mxu0 0.0
    %479 = vmatpush1.xpose.msra.mxu0 0.0
    %480 = vmatprep.subr.mxu0 0.0
    %481 = vmatpush1.xpose.msra.mxu0 0.0
    %482 = vmatprep.subr.mxu0 0.0
    %483 = vmatpush1.xpose.msra.mxu0 0.0
    %484 = vmatprep.subr.mxu0 0.0
    %485 = vmatpush1.xpose.msra.mxu0 0.0
    %486 = vmatprep.subr.mxu0 0.0
    %487 = vmatpush1.xpose.msra.mxu0 0.0
    %488 = vmatprep.subr.mxu0 0.0
    %489 = vmatpush1.xpose.msra.mxu0 0.0
    %490 = vmatprep.subr.mxu0 0.0
    %491 = vmatpush1.xpose.msra.mxu0 0.0
    %492 = vmatprep.subr.mxu0 0.0
    %493 = vmatpush1.xpose.msra.mxu0 0.0
    %494 = vmatprep.subr.mxu0 0.0
    %495 = vmatpush1.xpose.msra.mxu0 0.0
    %496 = vmatprep.subr.mxu0 0.0
    %497 = vmatpush1.xpose.msra.mxu0 0.0
    %498 = vmatprep.subr.mxu0 0.0
    %499 = vmatpush1.xpose.msra.mxu0 0.0
    %500 = vmatprep.subr.mxu0 0.0
    %501 = vmatpush1.xpose.msra.mxu0 0.0
    %502 = vmatprep.subr.mxu0 0.0
    %503 = vmatpush1.xpose.msra.mxu0 0.0
    %504 = vmatprep.subr.mxu0 0.0
    %505 = vmatpush1.xpose.msra.mxu0 0.0
    %506 = vmatprep.subr.mxu0 0.0
    %507 = vmatpush1.xpose.msra.mxu0 0.0
    %508 = vmatprep.subr.mxu0 0.0
    %509 = vmatpush1.xpose.msra.mxu0 0.0
    %510 = vmatprep.subr.mxu0 0.0
    %511 = vmatpush1.xpose.msra.mxu0 0.0
    %512 = vmatprep.subr.mxu0 0.0
    %513 = vmatpush1.xpose.msra.mxu0 0.0
    %514 = vmatprep.subr.mxu0 0.0
    %515 = vmatpush1.xpose.msra.mxu0 0.0
    %516 = vmatprep.mubr.f32.mxu0 0.0
    %517 = vmatmul.mubr.f32.gmra.mrb[0].mxu0 %v448
    %v518 = vpop.f32.mrb[0].mxu0
    %v519 = vadd.f32 0.0, %v518
    %v520 = vpop.f32.mrb[0].mxu0
    %521 = vdwg.mxu0
    %522 = vrot.lane.b32.xlu0 %v110, 120
    %v523 = vpop.permute.xlu0 %522
    %524 = vrot.lane.b32.xlu0 %v110, 88
    %v525 = vpop.permute.xlu0 %524
    %v526 = vsel %vm116, %v523, 0
    %v528 = vsel %vm116, %v525, 0
    %530 = vmatprep.subr.mxu0 0.0
    %531 = vmatpush1.xpose.msra.mxu0 %v528
    %532 = vmatprep.subr.mxu0 0.0
    %533 = vmatpush1.xpose.msra.mxu0 0.0
    %534 = vmatprep.subr.mxu0 0.0
    %535 = vmatpush1.xpose.msra.mxu0 0.0
    %536 = vmatprep.subr.mxu0 0.0
    %537 = vmatpush1.xpose.msra.mxu0 0.0
    %538 = vmatprep.subr.mxu0 0.0
    %539 = vmatpush1.xpose.msra.mxu0 0.0
    %540 = vmatprep.subr.mxu0 0.0
    %541 = vmatpush1.xpose.msra.mxu0 0.0
    %542 = vmatprep.subr.mxu0 0.0
    %543 = vmatpush1.xpose.msra.mxu0 0.0
    %544 = vmatprep.subr.mxu0 0.0
    %545 = vmatpush1.xpose.msra.mxu0 0.0
    %546 = vmatprep.subr.mxu0 0.0
    %547 = vmatpush1.xpose.msra.mxu0 0.0
    %548 = vmatprep.subr.mxu0 0.0
    %549 = vmatpush1.xpose.msra.mxu0 0.0
    %550 = vmatprep.subr.mxu0 0.0
    %551 = vmatpush1.xpose.msra.mxu0 0.0
    %552 = vmatprep.subr.mxu0 0.0
    %553 = vmatpush1.xpose.msra.mxu0 0.0
    %554 = vmatprep.subr.mxu0 0.0
    %555 = vmatpush1.xpose.msra.mxu0 0.0
    %556 = vmatprep.subr.mxu0 0.0
    %557 = vmatpush1.xpose.msra.mxu0 0.0
    %558 = vmatprep.subr.mxu0 0.0
    %559 = vmatpush1.xpose.msra.mxu0 0.0
    %560 = vmatprep.subr.mxu0 0.0
    %561 = vmatpush1.xpose.msra.mxu0 0.0
    %562 = vmatprep.subr.mxu0 0.0
    %563 = vmatpush1.xpose.msra.mxu0 0.0
    %564 = vmatprep.subr.mxu0 0.0
    %565 = vmatpush1.xpose.msra.mxu0 0.0
    %566 = vmatprep.subr.mxu0 0.0
    %567 = vmatpush1.xpose.msra.mxu0 0.0
    %568 = vmatprep.subr.mxu0 0.0
    %569 = vmatpush1.xpose.msra.mxu0 0.0
    %570 = vmatprep.subr.mxu0 0.0
    %571 = vmatpush1.xpose.msra.mxu0 0.0
    %572 = vmatprep.subr.mxu0 0.0
    %573 = vmatpush1.xpose.msra.mxu0 0.0
    %574 = vmatprep.subr.mxu0 0.0
    %575 = vmatpush1.xpose.msra.mxu0 0.0
    %576 = vmatprep.subr.mxu0 0.0
    %577 = vmatpush1.xpose.msra.mxu0 0.0
    %578 = vmatprep.subr.mxu0 0.0
    %579 = vmatpush1.xpose.msra.mxu0 0.0
    %580 = vmatprep.subr.mxu0 0.0
    %581 = vmatpush1.xpose.msra.mxu0 0.0
    %582 = vmatprep.subr.mxu0 0.0
    %583 = vmatpush1.xpose.msra.mxu0 0.0
    %584 = vmatprep.subr.mxu0 0.0
    %585 = vmatpush1.xpose.msra.mxu0 0.0
    %586 = vmatprep.subr.mxu0 0.0
    %587 = vmatpush1.xpose.msra.mxu0 0.0
    %588 = vmatprep.subr.mxu0 0.0
    %589 = vmatpush1.xpose.msra.mxu0 0.0
    %590 = vmatprep.subr.mxu0 0.0
    %591 = vmatpush1.xpose.msra.mxu0 0.0
    %592 = vmatprep.subr.mxu0 0.0
    %593 = vmatpush1.xpose.msra.mxu0 0.0
    %594 = vmatprep.mubr.f32.mxu0 0.0
    %595 = vmatmul.mubr.f32.gmra.mrb[0].mxu0 %v526
    %v596 = vpop.f32.mrb[0].mxu0
    %v597 = vadd.f32 0.0, %v596
    %v598 = vpop.f32.mrb[0].mxu0
    %599 = vdwg.mxu0
    %v600 = vmul.f32 %v519, 0.35355338
    %v601 = vmul.f32 %v597, 0.35355338
    %v602 = vsel %vm116, %v600, -inf
    %603 = vmax.xlane.f32.xlu0 %v602
    %v604 = vpop.xlane.xlu0 %603
    %v605 = vsel %vm116, %v601, -inf
    %606 = vmax.xlane.f32.xlu0 %v605
    %v607 = vpop.xlane.xlu0 %606
    %v608 = vsub.f32 %v600, %v604
    %v609 = vsub.f32 %v601, %v607
    %v610 = vmul.f32 %v608, 1.442695
    %v611 = vpow.pop %v610
    %v612 = vmul.f32 %v609, 1.442695
    %v613 = vpow.pop %v612
    %v614 = vsel %vm116, %v611, 0.0
    %615 = vadd.xlane.f32.xlu0 %v614
    %v616 = vpop.xlane.xlu0 %615
    %v617 = vsel %vm116, %v613, 0.0
    %618 = vadd.xlane.f32.xlu0 %v617
    %v619 = vpop.xlane.xlu0 %618
    %v620 = vrcp.pop %v616
    %v621 = vrcp.pop %v619
    %v622 = vmul.f32 %v611, %v620
    %v623 = vmul.f32 %v613, %v621
    %624 = vrot.lane.b32.xlu0 %v107, 56
    %v625 = vpop.permute.xlu0 %624
    %v628 = vsel %vm116, %v622, 0
    %630 = vmatprep.subr.mxu0 0.0
    %631 = vmatpush1.msra.mxu0 %v625
    %632 = vmatprep.subr.mxu0 0.0
    %633 = vmatpush1.msra.mxu0 0.0
    %634 = vmatprep.subr.mxu0 0.0
    %635 = vmatpush1.msra.mxu0 0.0
    %636 = vmatprep.subr.mxu0 0.0
    %637 = vmatpush1.msra.mxu0 0.0
    %638 = vmatprep.subr.mxu0 0.0
    %639 = vmatpush1.msra.mxu0 0.0
    %640 = vmatprep.subr.mxu0 0.0
    %641 = vmatpush1.msra.mxu0 0.0
    %642 = vmatprep.subr.mxu0 0.0
    %643 = vmatpush1.msra.mxu0 0.0
    %644 = vmatprep.subr.mxu0 0.0
    %645 = vmatpush1.msra.mxu0 0.0
    %646 = vmatprep.subr.mxu0 0.0
    %647 = vmatpush1.msra.mxu0 0.0
    %648 = vmatprep.subr.mxu0 0.0
    %649 = vmatpush1.msra.mxu0 0.0
    %650 = vmatprep.subr.mxu0 0.0
    %651 = vmatpush1.msra.mxu0 0.0
    %652 = vmatprep.subr.mxu0 0.0
    %653 = vmatpush1.msra.mxu0 0.0
    %654 = vmatprep.subr.mxu0 0.0
    %655 = vmatpush1.msra.mxu0 0.0
    %656 = vmatprep.subr.mxu0 0.0
    %657 = vmatpush1.msra.mxu0 0.0
    %658 = vmatprep.subr.mxu0 0.0
    %659 = vmatpush1.msra.mxu0 0.0
    %660 = vmatprep.subr.mxu0 0.0
    %661 = vmatpush1.msra.mxu0 0.0
    %662 = vmatprep.subr.mxu0 0.0
    %663 = vmatpush1.msra.mxu0 0.0
    %664 = vmatprep.subr.mxu0 0.0
    %665 = vmatpush1.msra.mxu0 0.0
    %666 = vmatprep.subr.mxu0 0.0
    %667 = vmatpush1.msra.mxu0 0.0
    %668 = vmatprep.subr.mxu0 0.0
    %669 = vmatpush1.msra.mxu0 0.0
    %670 = vmatprep.subr.mxu0 0.0
    %671 = vmatpush1.msra.mxu0 0.0
    %672 = vmatprep.subr.mxu0 0.0
    %673 = vmatpush1.msra.mxu0 0.0
    %674 = vmatprep.subr.mxu0 0.0
    %675 = vmatpush1.msra.mxu0 0.0
    %676 = vmatprep.subr.mxu0 0.0
    %677 = vmatpush1.msra.mxu0 0.0
    %678 = vmatprep.subr.mxu0 0.0
    %679 = vmatpush1.msra.mxu0 0.0
    %680 = vmatprep.subr.mxu0 0.0
    %681 = vmatpush1.msra.mxu0 0.0
    %682 = vmatprep.subr.mxu0 0.0
    %683 = vmatpush1.msra.mxu0 0.0
    %684 = vmatprep.subr.mxu0 0.0
    %685 = vmatpush1.msra.mxu0 0.0
    %686 = vmatprep.subr.mxu0 0.0
    %687 = vmatpush1.msra.mxu0 0.0
    %688 = vmatprep.subr.mxu0 0.0
    %689 = vmatpush1.msra.mxu0 0.0
    %690 = vmatprep.subr.mxu0 0.0
    %691 = vmatpush1.msra.mxu0 0.0
    %692 = vmatprep.subr.mxu0 0.0
    %693 = vmatpush1.msra.mxu0 0.0
    %694 = vmatprep.mubr.f32.mxu0 0.0
    %695 = vmatmul.mubr.f32.gmra.mrb[0].mxu0 %v628
    %v696 = vpop.f32.mrb[0].mxu0
    %v697 = vadd.f32 0.0, %v696
    %v698 = vpop.f32.mrb[0].mxu0
    %699 = vdwg.mxu0
    %700 = vrot.lane.b32.xlu0 %v110, 56
    %v701 = vpop.permute.xlu0 %700
    %v704 = vsel %vm116, %v623, 0
    %706 = vmatprep.subr.mxu0 0.0
    %707 = vmatpush1.msra.mxu0 %v701
    %708 = vmatprep.subr.mxu0 0.0
    %709 = vmatpush1.msra.mxu0 0.0
    %710 = vmatprep.subr.mxu0 0.0
    %711 = vmatpush1.msra.mxu0 0.0
    %712 = vmatprep.subr.mxu0 0.0
    %713 = vmatpush1.msra.mxu0 0.0
    %714 = vmatprep.subr.mxu0 0.0
    %715 = vmatpush1.msra.mxu0 0.0
    %716 = vmatprep.subr.mxu0 0.0
    %717 = vmatpush1.msra.mxu0 0.0
    %718 = vmatprep.subr.mxu0 0.0
    %719 = vmatpush1.msra.mxu0 0.0
    %720 = vmatprep.subr.mxu0 0.0
    %721 = vmatpush1.msra.mxu0 0.0
    %722 = vmatprep.subr.mxu0 0.0
    %723 = vmatpush1.msra.mxu0 0.0
    %724 = vmatprep.subr.mxu0 0.0
    %725 = vmatpush1.msra.mxu0 0.0
    %726 = vmatprep.subr.mxu0 0.0
    %727 = vmatpush1.msra.mxu0 0.0
    %728 = vmatprep.subr.mxu0 0.0
    %729 = vmatpush1.msra.mxu0 0.0
    %730 = vmatprep.subr.mxu0 0.0
    %731 = vmatpush1.msra.mxu0 0.0
    %732 = vmatprep.subr.mxu0 0.0
    %733 = vmatpush1.msra.mxu0 0.0
    %734 = vmatprep.subr.mxu0 0.0
    %735 = vmatpush1.msra.mxu0 0.0
    %736 = vmatprep.subr.mxu0 0.0
    %737 = vmatpush1.msra.mxu0 0.0
    %738 = vmatprep.subr.mxu0 0.0
    %739 = vmatpush1.msra.mxu0 0.0
    %740 = vmatprep.subr.mxu0 0.0
    %741 = vmatpush1.msra.mxu0 0.0
    %742 = vmatprep.subr.mxu0 0.0
    %743 = vmatpush1.msra.mxu0 0.0
    %744 = vmatprep.subr.mxu0 0.0
    %745 = vmatpush1.msra.mxu0 0.0
    %746 = vmatprep.subr.mxu0 0.0
    %747 = vmatpush1.msra.mxu0 0.0
    %748 = vmatprep.subr.mxu0 0.0
    %749 = vmatpush1.msra.mxu0 0.0
    %750 = vmatprep.subr.mxu0 0.0
    %751 = vmatpush1.msra.mxu0 0.0
    %752 = vmatprep.subr.mxu0 0.0
    %753 = vmatpush1.msra.mxu0 0.0
    %754 = vmatprep.subr.mxu0 0.0
    %755 = vmatpush1.msra.mxu0 0.0
    %756 = vmatprep.subr.mxu0 0.0
    %757 = vmatpush1.msra.mxu0 0.0
    %758 = vmatprep.subr.mxu0 0.0
    %759 = vmatpush1.msra.mxu0 0.0
    %760 = vmatprep.subr.mxu0 0.0
    %761 = vmatpush1.msra.mxu0 0.0
    %762 = vmatprep.subr.mxu0 0.0
    %763 = vmatpush1.msra.mxu0 0.0
    %764 = vmatprep.subr.mxu0 0.0
    %765 = vmatpush1.msra.mxu0 0.0
    %766 = vmatprep.subr.mxu0 0.0
    %767 = vmatpush1.msra.mxu0 0.0
    %768 = vmatprep.subr.mxu0 0.0
    %769 = vmatpush1.msra.mxu0 0.0
    %770 = vmatprep.mubr.f32.mxu0 0.0
    %771 = vmatmul.mubr.f32.gmra.mrb[0].mxu0 %v704
    %v772 = vpop.f32.mrb[0].mxu0
    %v773 = vadd.f32 0.0, %v772
    %v774 = vpop.f32.mrb[0].mxu0
    %775 = vdwg.mxu0
    %776 = vrot.lane.b32.xlu0 %v107, 112
    %v777 = vpop.permute.xlu0 %776
    %778 = vrot.lane.b32.xlu0 %v107, 80
    %v779 = vpop.permute.xlu0 %778
    %v780 = vsel %vm116, %v777, 0
    %v782 = vsel %vm116, %v779, 0
    %784 = vmatprep.subr.mxu0 0.0
    %785 = vmatpush1.xpose.msra.mxu0 %v782
    %786 = vmatprep.subr.mxu0 0.0
    %787 = vmatpush1.xpose.msra.mxu0 0.0
    %788 = vmatprep.subr.mxu0 0.0
    %789 = vmatpush1.xpose.msra.mxu0 0.0
    %790 = vmatprep.subr.mxu0 0.0
    %791 = vmatpush1.xpose.msra.mxu0 0.0
    %792 = vmatprep.subr.mxu0 0.0
    %793 = vmatpush1.xpose.msra.mxu0 0.0
    %794 = vmatprep.subr.mxu0 0.0
    %795 = vmatpush1.xpose.msra.mxu0 0.0
    %796 = vmatprep.subr.mxu0 0.0
    %797 = vmatpush1.xpose.msra.mxu0 0.0
    %798 = vmatprep.subr.mxu0 0.0
    %799 = vmatpush1.xpose.msra.mxu0 0.0
    %800 = vmatprep.subr.mxu0 0.0
    %801 = vmatpush1.xpose.msra.mxu0 0.0
    %802 = vmatprep.subr.mxu0 0.0
    %803 = vmatpush1.xpose.msra.mxu0 0.0
    %804 = vmatprep.subr.mxu0 0.0
    %805 = vmatpush1.xpose.msra.mxu0 0.0
    %806 = vmatprep.subr.mxu0 0.0
    %807 = vmatpush1.xpose.msra.mxu0 0.0
    %808 = vmatprep.subr.mxu0 0.0
    %809 = vmatpush1.xpose.msra.mxu0 0.0
    %810 = vmatprep.subr.mxu0 0.0
    %811 = vmatpush1.xpose.msra.mxu0 0.0
    %812 = vmatprep.subr.mxu0 0.0
    %813 = vmatpush1.xpose.msra.mxu0 0.0
    %814 = vmatprep.subr.mxu0 0.0
    %815 = vmatpush1.xpose.msra.mxu0 0.0
    %816 = vmatprep.subr.mxu0 0.0
    %817 = vmatpush1.xpose.msra.mxu0 0.0
    %818 = vmatprep.subr.mxu0 0.0
    %819 = vmatpush1.xpose.msra.mxu0 0.0
    %820 = vmatprep.subr.mxu0 0.0
    %821 = vmatpush1.xpose.msra.mxu0 0.0
    %822 = vmatprep.subr.mxu0 0.0
    %823 = vmatpush1.xpose.msra.mxu0 0.0
    %824 = vmatprep.subr.mxu0 0.0
    %825 = vmatpush1.xpose.msra.mxu0 0.0
    %826 = vmatprep.subr.mxu0 0.0
    %827 = vmatpush1.xpose.msra.mxu0 0.0
    %828 = vmatprep.subr.mxu0 0.0
    %829 = vmatpush1.xpose.msra.mxu0 0.0
    %830 = vmatprep.subr.mxu0 0.0
    %831 = vmatpush1.xpose.msra.mxu0 0.0
    %832 = vmatprep.subr.mxu0 0.0
    %833 = vmatpush1.xpose.msra.mxu0 0.0
    %834 = vmatprep.subr.mxu0 0.0
    %835 = vmatpush1.xpose.msra.mxu0 0.0
    %836 = vmatprep.subr.mxu0 0.0
    %837 = vmatpush1.xpose.msra.mxu0 0.0
    %838 = vmatprep.subr.mxu0 0.0
    %839 = vmatpush1.xpose.msra.mxu0 0.0
    %840 = vmatprep.subr.mxu0 0.0
    %841 = vmatpush1.xpose.msra.mxu0 0.0
    %842 = vmatprep.subr.mxu0 0.0
    %843 = vmatpush1.xpose.msra.mxu0 0.0
    %844 = vmatprep.subr.mxu0 0.0
    %845 = vmatpush1.xpose.msra.mxu0 0.0
    %846 = vmatprep.subr.mxu0 0.0
    %847 = vmatpush1.xpose.msra.mxu0 0.0
    %848 = vmatprep.mubr.f32.mxu0 0.0
    %849 = vmatmul.mubr.f32.gmra.mrb[0].mxu0 %v780
    %v850 = vpop.f32.mrb[0].mxu0
    %v851 = vadd.f32 0.0, %v850
    %v852 = vpop.f32.mrb[0].mxu0
    %853 = vdwg.mxu0
    %854 = vrot.lane.b32.xlu0 %v110, 112
    %v855 = vpop.permute.xlu0 %854
    %856 = vrot.lane.b32.xlu0 %v110, 80
    %v857 = vpop.permute.xlu0 %856
    %v858 = vsel %vm116, %v855, 0
    %v860 = vsel %vm116, %v857, 0
    %862 = vmatprep.subr.mxu0 0.0
    %863 = vmatpush1.xpose.msra.mxu0 %v860
    %864 = vmatprep.subr.mxu0 0.0
    %865 = vmatpush1.xpose.msra.mxu0 0.0
    %866 = vmatprep.subr.mxu0 0.0
    %867 = vmatpush1.xpose.msra.mxu0 0.0
    %868 = vmatprep.subr.mxu0 0.0
    %869 = vmatpush1.xpose.msra.mxu0 0.0
    %870 = vmatprep.subr.mxu0 0.0
    %871 = vmatpush1.xpose.msra.mxu0 0.0
    %872 = vmatprep.subr.mxu0 0.0
    %873 = vmatpush1.xpose.msra.mxu0 0.0
    %874 = vmatprep.subr.mxu0 0.0
    %875 = vmatpush1.xpose.msra.mxu0 0.0
    %876 = vmatprep.subr.mxu0 0.0
    %877 = vmatpush1.xpose.msra.mxu0 0.0
    %878 = vmatprep.subr.mxu0 0.0
    %879 = vmatpush1.xpose.msra.mxu0 0.0
    %880 = vmatprep.subr.mxu0 0.0
    %881 = vmatpush1.xpose.msra.mxu0 0.0
    %882 = vmatprep.subr.mxu0 0.0
    %883 = vmatpush1.xpose.msra.mxu0 0.0
    %884 = vmatprep.subr.mxu0 0.0
    %885 = vmatpush1.xpose.msra.mxu0 0.0
    %886 = vmatprep.subr.mxu0 0.0
    %887 = vmatpush1.xpose.msra.mxu0 0.0
    %888 = vmatprep.subr.mxu0 0.0
    %889 = vmatpush1.xpose.msra.mxu0 0.0
    %890 = vmatprep.subr.mxu0 0.0
    %891 = vmatpush1.xpose.msra.mxu0 0.0
    %892 = vmatprep.subr.mxu0 0.0
    %893 = vmatpush1.xpose.msra.mxu0 0.0
    %894 = vmatprep.subr.mxu0 0.0
    %895 = vmatpush1.xpose.msra.mxu0 0.0
    %896 = vmatprep.subr.mxu0 0.0
    %897 = vmatpush1.xpose.msra.mxu0 0.0
    %898 = vmatprep.subr.mxu0 0.0
    %899 = vmatpush1.xpose.msra.mxu0 0.0
    %900 = vmatprep.subr.mxu0 0.0
    %901 = vmatpush1.xpose.msra.mxu0 0.0
    %902 = vmatprep.subr.mxu0 0.0
    %903 = vmatpush1.xpose.msra.mxu0 0.0
    %904 = vmatprep.subr.mxu0 0.0
    %905 = vmatpush1.xpose.msra.mxu0 0.0
    %906 = vmatprep.subr.mxu0 0.0
    %907 = vmatpush1.xpose.msra.mxu0 0.0
    %908 = vmatprep.subr.mxu0 0.0
    %909 = vmatpush1.xpose.msra.mxu0 0.0
    %910 = vmatprep.subr.mxu0 0.0
    %911 = vmatpush1.xpose.msra.mxu0 0.0
    %912 = vmatprep.subr.mxu0 0.0
    %913 = vmatpush1.xpose.msra.mxu0 0.0
    %914 = vmatprep.subr.mxu0 0.0
    %915 = vmatpush1.xpose.msra.mxu0 0.0
    %916 = vmatprep.subr.mxu0 0.0
    %917 = vmatpush1.xpose.msra.mxu0 0.0
    %918 = vmatprep.subr.mxu0 0.0
    %919 = vmatpush1.xpose.msra.mxu0 0.0
    %920 = vmatprep.subr.mxu0 0.0
    %921 = vmatpush1.xpose.msra.mxu0 0.0
    %922 = vmatprep.subr.mxu0 0.0
    %923 = vmatpush1.xpose.msra.mxu0 0.0
    %924 = vmatprep.subr.mxu0 0.0
    %925 = vmatpush1.xpose.msra.mxu0 0.0
    %926 = vmatprep.mubr.f32.mxu0 0.0
    %927 = vmatmul.mubr.f32.gmra.mrb[0].mxu0 %v858
    %v928 = vpop.f32.mrb[0].mxu0
    %v929 = vadd.f32 0.0, %v928
    %v930 = vpop.f32.mrb[0].mxu0
    %931 = vdwg.mxu0
    %v932 = vmul.f32 %v851, 0.35355338
    %v933 = vmul.f32 %v929, 0.35355338
    %v934 = vsel %vm116, %v932, -inf
    %935 = vmax.xlane.f32.xlu0 %v934
    %v936 = vpop.xlane.xlu0 %935
    %v937 = vsel %vm116, %v933, -inf
    %938 = vmax.xlane.f32.xlu0 %v937
    %v939 = vpop.xlane.xlu0 %938
    %v940 = vsub.f32 %v932, %v936
    %v941 = vsub.f32 %v933, %v939
    %v942 = vmul.f32 %v940, 1.442695
    %v943 = vpow.pop %v942
    %v944 = vmul.f32 %v941, 1.442695
    %v945 = vpow.pop %v944
    %v946 = vsel %vm116, %v943, 0.0
    %947 = vadd.xlane.f32.xlu0 %v946
    %v948 = vpop.xlane.xlu0 %947
    %v949 = vsel %vm116, %v945, 0.0
    %950 = vadd.xlane.f32.xlu0 %v949
    %v951 = vpop.xlane.xlu0 %950
    %v952 = vrcp.pop %v948
    %v953 = vrcp.pop %v951
    %v954 = vmul.f32 %v943, %v952
    %v955 = vmul.f32 %v945, %v953
    %956 = vrot.lane.b32.xlu0 %v107, 48
    %v957 = vpop.permute.xlu0 %956
    %v960 = vsel %vm116, %v954, 0
    %962 = vmatprep.subr.mxu0 0.0
    %963 = vmatpush1.msra.mxu0 %v957
    %964 = vmatprep.subr.mxu0 0.0
    %965 = vmatpush1.msra.mxu0 0.0
    %966 = vmatprep.subr.mxu0 0.0
    %967 = vmatpush1.msra.mxu0 0.0
    %968 = vmatprep.subr.mxu0 0.0
    %969 = vmatpush1.msra.mxu0 0.0
    %970 = vmatprep.subr.mxu0 0.0
    %971 = vmatpush1.msra.mxu0 0.0
    %972 = vmatprep.subr.mxu0 0.0
    %973 = vmatpush1.msra.mxu0 0.0
    %974 = vmatprep.subr.mxu0 0.0
    %975 = vmatpush1.msra.mxu0 0.0
    %976 = vmatprep.subr.mxu0 0.0
    %977 = vmatpush1.msra.mxu0 0.0
    %978 = vmatprep.subr.mxu0 0.0
    %979 = vmatpush1.msra.mxu0 0.0
    %980 = vmatprep.subr.mxu0 0.0
    %981 = vmatpush1.msra.mxu0 0.0
    %982 = vmatprep.subr.mxu0 0.0
    %983 = vmatpush1.msra.mxu0 0.0
    %984 = vmatprep.subr.mxu0 0.0
    %985 = vmatpush1.msra.mxu0 0.0
    %986 = vmatprep.subr.mxu0 0.0
    %987 = vmatpush1.msra.mxu0 0.0
    %988 = vmatprep.subr.mxu0 0.0
    %989 = vmatpush1.msra.mxu0 0.0
    %990 = vmatprep.subr.mxu0 0.0
    %991 = vmatpush1.msra.mxu0 0.0
    %992 = vmatprep.subr.mxu0 0.0
    %993 = vmatpush1.msra.mxu0 0.0
    %994 = vmatprep.subr.mxu0 0.0
    %995 = vmatpush1.msra.mxu0 0.0
    %996 = vmatprep.subr.mxu0 0.0
    %997 = vmatpush1.msra.mxu0 0.0
    %998 = vmatprep.subr.mxu0 0.0
    %999 = vmatpush1.msra.mxu0 0.0
    %1000 = vmatprep.subr.mxu0 0.0
    %1001 = vmatpush1.msra.mxu0 0.0
    %1002 = vmatprep.subr.mxu0 0.0
    %1003 = vmatpush1.msra.mxu0 0.0
    %1004 = vmatprep.subr.mxu0 0.0
    %1005 = vmatpush1.msra.mxu0 0.0
    %1006 = vmatprep.subr.mxu0 0.0
    %1007 = vmatpush1.msra.mxu0 0.0
    %1008 = vmatprep.subr.mxu0 0.0
    %1009 = vmatpush1.msra.mxu0 0.0
    %1010 = vmatprep.subr.mxu0 0.0
    %1011 = vmatpush1.msra.mxu0 0.0
    %1012 = vmatprep.subr.mxu0 0.0
    %1013 = vmatpush1.msra.mxu0 0.0
    %1014 = vmatprep.subr.mxu0 0.0
    %1015 = vmatpush1.msra.mxu0 0.0
    %1016 = vmatprep.subr.mxu0 0.0
    %1017 = vmatpush1.msra.mxu0 0.0
    %1018 = vmatprep.subr.mxu0 0.0
    %1019 = vmatpush1.msra.mxu0 0.0
    %1020 = vmatprep.subr.mxu0 0.0
    %1021 = vmatpush1.msra.mxu0 0.0
    %1022 = vmatprep.subr.mxu0 0.0
    %1023 = vmatpush1.msra.mxu0 0.0
    %1024 = vmatprep.subr.mxu0 0.0
    %1025 = vmatpush1.msra.mxu0 0.0
    %1026 = vmatprep.mubr.f32.mxu0 0.0
    %1027 = vmatmul.mubr.f32.gmra.mrb[0].mxu0 %v960
    %v1028 = vpop.f32.mrb[0].mxu0
    %v1029 = vadd.f32 0.0, %v1028
    %v1030 = vpop.f32.mrb[0].mxu0
    %1031 = vdwg.mxu0
    %1032 = vrot.lane.b32.xlu0 %v110, 48
    %v1033 = vpop.permute.xlu0 %1032
    %v1036 = vsel %vm116, %v955, 0
    %1038 = vmatprep.subr.mxu0 0.0
    %1039 = vmatpush1.msra.mxu0 %v1033
    %1040 = vmatprep.subr.mxu0 0.0
    %1041 = vmatpush1.msra.mxu0 0.0
    %1042 = vmatprep.subr.mxu0 0.0
    %1043 = vmatpush1.msra.mxu0 0.0
    %1044 = vmatprep.subr.mxu0 0.0
    %1045 = vmatpush1.msra.mxu0 0.0
    %1046 = vmatprep.subr.mxu0 0.0
    %1047 = vmatpush1.msra.mxu0 0.0
    %1048 = vmatprep.subr.mxu0 0.0
    %1049 = vmatpush1.msra.mxu0 0.0
    %1050 = vmatprep.subr.mxu0 0.0
    %1051 = vmatpush1.msra.mxu0 0.0
    %1052 = vmatprep.subr.mxu0 0.0
    %1053 = vmatpush1.msra.mxu0 0.0
    %1054 = vmatprep.subr.mxu0 0.0
    %1055 = vmatpush1.msra.mxu0 0.0
    %1056 = vmatprep.subr.mxu0 0.0
    %1057 = vmatpush1.msra.mxu0 0.0
    %1058 = vmatprep.subr.mxu0 0.0
    %1059 = vmatpush1.msra.mxu0 0.0
    %1060 = vmatprep.subr.mxu0 0.0
    %1061 = vmatpush1.msra.mxu0 0.0
    %1062 = vmatprep.subr.mxu0 0.0
    %1063 = vmatpush1.msra.mxu0 0.0
    %1064 = vmatprep.subr.mxu0 0.0
    %1065 = vmatpush1.msra.mxu0 0.0
    %1066 = vmatprep.subr.mxu0 0.0
    %1067 = vmatpush1.msra.mxu0 0.0
    %1068 = vmatprep.subr.mxu0 0.0
    %1069 = vmatpush1.msra.mxu0 0.0
    %1070 = vmatprep.subr.mxu0 0.0
    %1071 = vmatpush1.msra.mxu0 0.0
    %1072 = vmatprep.subr.mxu0 0.0
    %1073 = vmatpush1.msra.mxu0 0.0
    %1074 = vmatprep.subr.mxu0 0.0
    %1075 = vmatpush1.msra.mxu0 0.0
    %1076 = vmatprep.subr.mxu0 0.0
    %1077 = vmatpush1.msra.mxu0 0.0
    %1078 = vmatprep.subr.mxu0 0.0
    %1079 = vmatpush1.msra.mxu0 0.0
    %1080 = vmatprep.subr.mxu0 0.0
    %1081 = vmatpush1.msra.mxu0 0.0
    %1082 = vmatprep.subr.mxu0 0.0
    %1083 = vmatpush1.msra.mxu0 0.0
    %1084 = vmatprep.subr.mxu0 0.0
    %1085 = vmatpush1.msra.mxu0 0.0
    %1086 = vmatprep.subr.mxu0 0.0
    %1087 = vmatpush1.msra.mxu0 0.0
    %1088 = vmatprep.subr.mxu0 0.0
    %1089 = vmatpush1.msra.mxu0 0.0
    %1090 = vmatprep.subr.mxu0 0.0
    %1091 = vmatpush1.msra.mxu0 0.0
    %1092 = vmatprep.subr.mxu0 0.0
    %1093 = vmatpush1.msra.mxu0 0.0
    %1094 = vmatprep.subr.mxu0 0.0
    %1095 = vmatpush1.msra.mxu0 0.0
    %1096 = vmatprep.subr.mxu0 0.0
    %1097 = vmatpush1.msra.mxu0 0.0
    %1098 = vmatprep.subr.mxu0 0.0
    %1099 = vmatpush1.msra.mxu0 0.0
    %1100 = vmatprep.subr.mxu0 0.0
    %1101 = vmatpush1.msra.mxu0 0.0
    %1102 = vmatprep.mubr.f32.mxu0 0.0
    %1103 = vmatmul.mubr.f32.gmra.mrb[0].mxu0 %v1036
    %v1104 = vpop.f32.mrb[0].mxu0
    %v1105 = vadd.f32 0.0, %v1104
    %v1106 = vpop.f32.mrb[0].mxu0
    %1107 = vdwg.mxu0
    %1108 = vrot.lane.b32.xlu0 %v107, 104
    %v1109 = vpop.permute.xlu0 %1108
    %1110 = vrot.lane.b32.xlu0 %v107, 72
    %v1111 = vpop.permute.xlu0 %1110
    %v1112 = vsel %vm116, %v1109, 0
    %v1114 = vsel %vm116, %v1111, 0
    %1116 = vmatprep.subr.mxu0 0.0
    %1117 = vmatpush1.xpose.msra.mxu0 %v1114
    %1118 = vmatprep.subr.mxu0 0.0
    %1119 = vmatpush1.xpose.msra.mxu0 0.0
    %1120 = vmatprep.subr.mxu0 0.0
    %1121 = vmatpush1.xpose.msra.mxu0 0.0
    %1122 = vmatprep.subr.mxu0 0.0
    %1123 = vmatpush1.xpose.msra.mxu0 0.0
    %1124 = vmatprep.subr.mxu0 0.0
    %1125 = vmatpush1.xpose.msra.mxu0 0.0
    %1126 = vmatprep.subr.mxu0 0.0
    %1127 = vmatpush1.xpose.msra.mxu0 0.0
    %1128 = vmatprep.subr.mxu0 0.0
    %1129 = vmatpush1.xpose.msra.mxu0 0.0
    %1130 = vmatprep.subr.mxu0 0.0
    %1131 = vmatpush1.xpose.msra.mxu0 0.0
    %1132 = vmatprep.subr.mxu0 0.0
    %1133 = vmatpush1.xpose.msra.mxu0 0.0
    %1134 = vmatprep.subr.mxu0 0.0
    %1135 = vmatpush1.xpose.msra.mxu0 0.0
    %1136 = vmatprep.subr.mxu0 0.0
    %1137 = vmatpush1.xpose.msra.mxu0 0.0
    %1138 = vmatprep.subr.mxu0 0.0
    %1139 = vmatpush1.xpose.msra.mxu0 0.0
    %1140 = vmatprep.subr.mxu0 0.0
    %1141 = vmatpush1.xpose.msra.mxu0 0.0
    %1142 = vmatprep.subr.mxu0 0.0
    %1143 = vmatpush1.xpose.msra.mxu0 0.0
    %1144 = vmatprep.subr.mxu0 0.0
    %1145 = vmatpush1.xpose.msra.mxu0 0.0
    %1146 = vmatprep.subr.mxu0 0.0
    %1147 = vmatpush1.xpose.msra.mxu0 0.0
    %1148 = vmatprep.subr.mxu0 0.0
    %1149 = vmatpush1.xpose.msra.mxu0 0.0
    %1150 = vmatprep.subr.mxu0 0.0
    %1151 = vmatpush1.xpose.msra.mxu0 0.0
    %1152 = vmatprep.subr.mxu0 0.0
    %1153 = vmatpush1.xpose.msra.mxu0 0.0
    %1154 = vmatprep.subr.mxu0 0.0
    %1155 = vmatpush1.xpose.msra.mxu0 0.0
    %1156 = vmatprep.subr.mxu0 0.0
    %1157 = vmatpush1.xpose.msra.mxu0 0.0
    %1158 = vmatprep.subr.mxu0 0.0
    %1159 = vmatpush1.xpose.msra.mxu0 0.0
    %1160 = vmatprep.subr.mxu0 0.0
    %1161 = vmatpush1.xpose.msra.mxu0 0.0
    %1162 = vmatprep.subr.mxu0 0.0
    %1163 = vmatpush1.xpose.msra.mxu0 0.0
    %1164 = vmatprep.subr.mxu0 0.0
    %1165 = vmatpush1.xpose.msra.mxu0 0.0
    %1166 = vmatprep.subr.mxu0 0.0
    %1167 = vmatpush1.xpose.msra.mxu0 0.0
    %1168 = vmatprep.subr.mxu0 0.0
    %1169 = vmatpush1.xpose.msra.mxu0 0.0
    %1170 = vmatprep.subr.mxu0 0.0
    %1171 = vmatpush1.xpose.msra.mxu0 0.0
    %1172 = vmatprep.subr.mxu0 0.0
    %1173 = vmatpush1.xpose.msra.mxu0 0.0
    %1174 = vmatprep.subr.mxu0 0.0
    %1175 = vmatpush1.xpose.msra.mxu0 0.0
    %1176 = vmatprep.subr.mxu0 0.0
    %1177 = vmatpush1.xpose.msra.mxu0 0.0
    %1178 = vmatprep.subr.mxu0 0.0
    %1179 = vmatpush1.xpose.msra.mxu0 0.0
    %1180 = vmatprep.mubr.f32.mxu0 0.0
    %1181 = vmatmul.mubr.f32.gmra.mrb[0].mxu0 %v1112
    %v1182 = vpop.f32.mrb[0].mxu0
    %v1183 = vadd.f32 0.0, %v1182
    %v1184 = vpop.f32.mrb[0].mxu0
    %1185 = vdwg.mxu0
    %1186 = vrot.lane.b32.xlu0 %v110, 104
    %v1187 = vpop.permute.xlu0 %1186
    %1188 = vrot.lane.b32.xlu0 %v110, 72
    %v1189 = vpop.permute.xlu0 %1188
    %v1190 = vsel %vm116, %v1187, 0
    %v1192 = vsel %vm116, %v1189, 0
    %1194 = vmatprep.subr.mxu0 0.0
    %1195 = vmatpush1.xpose.msra.mxu0 %v1192
    %1196 = vmatprep.subr.mxu0 0.0
    %1197 = vmatpush1.xpose.msra.mxu0 0.0
    %1198 = vmatprep.subr.mxu0 0.0
    %1199 = vmatpush1.xpose.msra.mxu0 0.0
    %1200 = vmatprep.subr.mxu0 0.0
    %1201 = vmatpush1.xpose.msra.mxu0 0.0
    %1202 = vmatprep.subr.mxu0 0.0
    %1203 = vmatpush1.xpose.msra.mxu0 0.0
    %1204 = vmatprep.subr.mxu0 0.0
    %1205 = vmatpush1.xpose.msra.mxu0 0.0
    %1206 = vmatprep.subr.mxu0 0.0
    %1207 = vmatpush1.xpose.msra.mxu0 0.0
    %1208 = vmatprep.subr.mxu0 0.0
    %1209 = vmatpush1.xpose.msra.mxu0 0.0
    %1210 = vmatprep.subr.mxu0 0.0
    %1211 = vmatpush1.xpose.msra.mxu0 0.0
    %1212 = vmatprep.subr.mxu0 0.0
    %1213 = vmatpush1.xpose.msra.mxu0 0.0
    %1214 = vmatprep.subr.mxu0 0.0
    %1215 = vmatpush1.xpose.msra.mxu0 0.0
    %1216 = vmatprep.subr.mxu0 0.0
    %1217 = vmatpush1.xpose.msra.mxu0 0.0
    %1218 = vmatprep.subr.mxu0 0.0
    %1219 = vmatpush1.xpose.msra.mxu0 0.0
    %1220 = vmatprep.subr.mxu0 0.0
    %1221 = vmatpush1.xpose.msra.mxu0 0.0
    %1222 = vmatprep.subr.mxu0 0.0
    %1223 = vmatpush1.xpose.msra.mxu0 0.0
    %1224 = vmatprep.subr.mxu0 0.0
    %1225 = vmatpush1.xpose.msra.mxu0 0.0
    %1226 = vmatprep.subr.mxu0 0.0
    %1227 = vmatpush1.xpose.msra.mxu0 0.0
    %1228 = vmatprep.subr.mxu0 0.0
    %1229 = vmatpush1.xpose.msra.mxu0 0.0
    %1230 = vmatprep.subr.mxu0 0.0
    %1231 = vmatpush1.xpose.msra.mxu0 0.0
    %1232 = vmatprep.subr.mxu0 0.0
    %1233 = vmatpush1.xpose.msra.mxu0 0.0
    %1234 = vmatprep.subr.mxu0 0.0
    %1235 = vmatpush1.xpose.msra.mxu0 0.0
    %1236 = vmatprep.subr.mxu0 0.0
    %1237 = vmatpush1.xpose.msra.mxu0 0.0
    %1238 = vmatprep.subr.mxu0 0.0
    %1239 = vmatpush1.xpose.msra.mxu0 0.0
    %1240 = vmatprep.subr.mxu0 0.0
    %1241 = vmatpush1.xpose.msra.mxu0 0.0
    %1242 = vmatprep.subr.mxu0 0.0
    %1243 = vmatpush1.xpose.msra.mxu0 0.0
    %1244 = vmatprep.subr.mxu0 0.0
    %1245 = vmatpush1.xpose.msra.mxu0 0.0
    %1246 = vmatprep.subr.mxu0 0.0
    %1247 = vmatpush1.xpose.msra.mxu0 0.0
    %1248 = vmatprep.subr.mxu0 0.0
    %1249 = vmatpush1.xpose.msra.mxu0 0.0
    %1250 = vmatprep.subr.mxu0 0.0
    %1251 = vmatpush1.xpose.msra.mxu0 0.0
    %1252 = vmatprep.subr.mxu0 0.0
    %1253 = vmatpush1.xpose.msra.mxu0 0.0
    %1254 = vmatprep.subr.mxu0 0.0
    %1255 = vmatpush1.xpose.msra.mxu0 0.0
    %1256 = vmatprep.subr.mxu0 0.0
    %1257 = vmatpush1.xpose.msra.mxu0 0.0
    %1258 = vmatprep.mubr.f32.mxu0 0.0
    %1259 = vmatmul.mubr.f32.gmra.mrb[0].mxu0 %v1190
    %v1260 = vpop.f32.mrb[0].mxu0
    %v1261 = vadd.f32 0.0, %v1260
    %v1262 = vpop.f32.mrb[0].mxu0
    %1263 = vdwg.mxu0
    %v1264 = vmul.f32 %v1183, 0.35355338
    %v1265 = vmul.f32 %v1261, 0.35355338
    %v1266 = vsel %vm116, %v1264, -inf
    %1267 = vmax.xlane.f32.xlu0 %v1266
    %v1268 = vpop.xlane.xlu0 %1267
    %v1269 = vsel %vm116, %v1265, -inf
    %1270 = vmax.xlane.f32.xlu0 %v1269
    %v1271 = vpop.xlane.xlu0 %1270
    %v1272 = vsub.f32 %v1264, %v1268
    %v1273 = vsub.f32 %v1265, %v1271
    %v1274 = vmul.f32 %v1272, 1.442695
    %v1275 = vpow.pop %v1274
    %v1276 = vmul.f32 %v1273, 1.442695
    %v1277 = vpow.pop %v1276
    %v1278 = vsel %vm116, %v1275, 0.0
    %1279 = vadd.xlane.f32.xlu0 %v1278
    %v1280 = vpop.xlane.xlu0 %1279
    %v1281 = vsel %vm116, %v1277, 0.0
    %1282 = vadd.xlane.f32.xlu0 %v1281
    %v1283 = vpop.xlane.xlu0 %1282
    %v1284 = vrcp.pop %v1280
    %v1285 = vrcp.pop %v1283
    %v1286 = vmul.f32 %v1275, %v1284
    %v1287 = vmul.f32 %v1277, %v1285
    %1288 = vrot.lane.b32.xlu0 %v107, 40
    %v1289 = vpop.permute.xlu0 %1288
    %v1292 = vsel %vm116, %v1286, 0
    %1294 = vmatprep.subr.mxu0 0.0
    %1295 = vmatpush1.msra.mxu0 %v1289
    %1296 = vmatprep.subr.mxu0 0.0
    %1297 = vmatpush1.msra.mxu0 0.0
    %1298 = vmatprep.subr.mxu0 0.0
    %1299 = vmatpush1.msra.mxu0 0.0
    %1300 = vmatprep.subr.mxu0 0.0
    %1301 = vmatpush1.msra.mxu0 0.0
    %1302 = vmatprep.subr.mxu0 0.0
    %1303 = vmatpush1.msra.mxu0 0.0
    %1304 = vmatprep.subr.mxu0 0.0
    %1305 = vmatpush1.msra.mxu0 0.0
    %1306 = vmatprep.subr.mxu0 0.0
    %1307 = vmatpush1.msra.mxu0 0.0
    %1308 = vmatprep.subr.mxu0 0.0
    %1309 = vmatpush1.msra.mxu0 0.0
    %1310 = vmatprep.subr.mxu0 0.0
    %1311 = vmatpush1.msra.mxu0 0.0
    %1312 = vmatprep.subr.mxu0 0.0
    %1313 = vmatpush1.msra.mxu0 0.0
    %1314 = vmatprep.subr.mxu0 0.0
    %1315 = vmatpush1.msra.mxu0 0.0
    %1316 = vmatprep.subr.mxu0 0.0
    %1317 = vmatpush1.msra.mxu0 0.0
    %1318 = vmatprep.subr.mxu0 0.0
    %1319 = vmatpush1.msra.mxu0 0.0
    %1320 = vmatprep.subr.mxu0 0.0
    %1321 = vmatpush1.msra.mxu0 0.0
    %1322 = vmatprep.subr.mxu0 0.0
    %1323 = vmatpush1.msra.mxu0 0.0
    %1324 = vmatprep.subr.mxu0 0.0
    %1325 = vmatpush1.msra.mxu0 0.0
    %1326 = vmatprep.subr.mxu0 0.0
    %1327 = vmatpush1.msra.mxu0 0.0
    %1328 = vmatprep.subr.mxu0 0.0
    %1329 = vmatpush1.msra.mxu0 0.0
    %1330 = vmatprep.subr.mxu0 0.0
    %1331 = vmatpush1.msra.mxu0 0.0
    %1332 = vmatprep.subr.mxu0 0.0
    %1333 = vmatpush1.msra.mxu0 0.0
    %1334 = vmatprep.subr.mxu0 0.0
    %1335 = vmatpush1.msra.mxu0 0.0
    %1336 = vmatprep.subr.mxu0 0.0
    %1337 = vmatpush1.msra.mxu0 0.0
    %1338 = vmatprep.subr.mxu0 0.0
    %1339 = vmatpush1.msra.mxu0 0.0
    %1340 = vmatprep.subr.mxu0 0.0
    %1341 = vmatpush1.msra.mxu0 0.0
    %1342 = vmatprep.subr.mxu0 0.0
    %1343 = vmatpush1.msra.mxu0 0.0
    %1344 = vmatprep.subr.mxu0 0.0
    %1345 = vmatpush1.msra.mxu0 0.0
    %1346 = vmatprep.subr.mxu0 0.0
    %1347 = vmatpush1.msra.mxu0 0.0
    %1348 = vmatprep.subr.mxu0 0.0
    %1349 = vmatpush1.msra.mxu0 0.0
    %1350 = vmatprep.subr.mxu0 0.0
    %1351 = vmatpush1.msra.mxu0 0.0
    %1352 = vmatprep.subr.mxu0 0.0
    %1353 = vmatpush1.msra.mxu0 0.0
    %1354 = vmatprep.subr.mxu0 0.0
    %1355 = vmatpush1.msra.mxu0 0.0
    %1356 = vmatprep.subr.mxu0 0.0
    %1357 = vmatpush1.msra.mxu0 0.0
    %1358 = vmatprep.mubr.f32.mxu0 0.0
    %1359 = vmatmul.mubr.f32.gmra.mrb[0].mxu0 %v1292
    %v1360 = vpop.f32.mrb[0].mxu0
    %v1361 = vadd.f32 0.0, %v1360
    %v1362 = vpop.f32.mrb[0].mxu0
    %1363 = vdwg.mxu0
    %1364 = vrot.lane.b32.xlu0 %v110, 40
    %v1365 = vpop.permute.xlu0 %1364
    %v1368 = vsel %vm116, %v1287, 0
    %1370 = vmatprep.subr.mxu0 0.0
    %1371 = vmatpush1.msra.mxu0 %v1365
    %1372 = vmatprep.subr.mxu0 0.0
    %1373 = vmatpush1.msra.mxu0 0.0
    %1374 = vmatprep.subr.mxu0 0.0
    %1375 = vmatpush1.msra.mxu0 0.0
    %1376 = vmatprep.subr.mxu0 0.0
    %1377 = vmatpush1.msra.mxu0 0.0
    %1378 = vmatprep.subr.mxu0 0.0
    %1379 = vmatpush1.msra.mxu0 0.0
    %1380 = vmatprep.subr.mxu0 0.0
    %1381 = vmatpush1.msra.mxu0 0.0
    %1382 = vmatprep.subr.mxu0 0.0
    %1383 = vmatpush1.msra.mxu0 0.0
    %1384 = vmatprep.subr.mxu0 0.0
    %1385 = vmatpush1.msra.mxu0 0.0
    %1386 = vmatprep.subr.mxu0 0.0
    %1387 = vmatpush1.msra.mxu0 0.0
    %1388 = vmatprep.subr.mxu0 0.0
    %1389 = vmatpush1.msra.mxu0 0.0
    %1390 = vmatprep.subr.mxu0 0.0
    %1391 = vmatpush1.msra.mxu0 0.0
    %1392 = vmatprep.subr.mxu0 0.0
    %1393 = vmatpush1.msra.mxu0 0.0
    %1394 = vmatprep.subr.mxu0 0.0
    %1395 = vmatpush1.msra.mxu0 0.0
    %1396 = vmatprep.subr.mxu0 0.0
    %1397 = vmatpush1.msra.mxu0 0.0
    %1398 = vmatprep.subr.mxu0 0.0
    %1399 = vmatpush1.msra.mxu0 0.0
    %1400 = vmatprep.subr.mxu0 0.0
    %1401 = vmatpush1.msra.mxu0 0.0
    %1402 = vmatprep.subr.mxu0 0.0
    %1403 = vmatpush1.msra.mxu0 0.0
    %1404 = vmatprep.subr.mxu0 0.0
    %1405 = vmatpush1.msra.mxu0 0.0
    %1406 = vmatprep.subr.mxu0 0.0
    %1407 = vmatpush1.msra.mxu0 0.0
    %1408 = vmatprep.subr.mxu0 0.0
    %1409 = vmatpush1.msra.mxu0 0.0
    %1410 = vmatprep.subr.mxu0 0.0
    %1411 = vmatpush1.msra.mxu0 0.0
    %1412 = vmatprep.subr.mxu0 0.0
    %1413 = vmatpush1.msra.mxu0 0.0
    %1414 = vmatprep.subr.mxu0 0.0
    %1415 = vmatpush1.msra.mxu0 0.0
    %1416 = vmatprep.subr.mxu0 0.0
    %1417 = vmatpush1.msra.mxu0 0.0
    %1418 = vmatprep.subr.mxu0 0.0
    %1419 = vmatpush1.msra.mxu0 0.0
    %1420 = vmatprep.subr.mxu0 0.0
    %1421 = vmatpush1.msra.mxu0 0.0
    %1422 = vmatprep.subr.mxu0 0.0
    %1423 = vmatpush1.msra.mxu0 0.0
    %1424 = vmatprep.subr.mxu0 0.0
    %1425 = vmatpush1.msra.mxu0 0.0
    %1426 = vmatprep.subr.mxu0 0.0
    %1427 = vmatpush1.msra.mxu0 0.0
    %1428 = vmatprep.subr.mxu0 0.0
    %1429 = vmatpush1.msra.mxu0 0.0
    %1430 = vmatprep.subr.mxu0 0.0
    %1431 = vmatpush1.msra.mxu0 0.0
    %1432 = vmatprep.subr.mxu0 0.0
    %1433 = vmatpush1.msra.mxu0 0.0
    %1434 = vmatprep.mubr.f32.mxu0 0.0
    %1435 = vmatmul.mubr.f32.gmra.mrb[0].mxu0 %v1368
    %v1436 = vpop.f32.mrb[0].mxu0
    %v1437 = vadd.f32 0.0, %v1436
    %v1438 = vpop.f32.mrb[0].mxu0
    %1439 = vdwg.mxu0
    %1442 = vrot.lane.b32.xlu0 %v697, 8
    %v1443 = vpop.permute.xlu0 %1442
    %1444 = vrot.lane.b32.xlu0 %v773, 8
    %v1445 = vpop.permute.xlu0 %1444
    %1450 = vrot.lane.b32.xlu0 %v1029, 16
    %v1451 = vpop.permute.xlu0 %1450
    %1452 = vrot.lane.b32.xlu0 %v1105, 16
    %v1453 = vpop.permute.xlu0 %1452
    %1458 = vrot.lane.b32.xlu0 %v1361, 24
    %v1459 = vpop.permute.xlu0 %1458
    %1460 = vrot.lane.b32.xlu0 %v1437, 24
    %v1461 = vpop.permute.xlu0 %1460
    %v1464 = vsel %vm116, %v365, %v1443
    %v1465 = vsel %vm116, %v441, %v1445
    %vm1466 = vcmask 130048
    %v1467 = vsel %vm1466, %v1464, %v1451
    %v1468 = vsel %vm1466, %v1465, %v1453
    %vm1469 = vcmask 195584
    %v1470 = vsel %vm1469, %v1467, %v1459
    %v1471 = vsel %vm1469, %v1468, %v1461
    %v1472 = vld [vmem:[#allocation5 + $0x10] sm:$0xf]
    %v1473 = vld [vmem:[#allocation5 + $0x14] sm:$0xf]
    %v1474 = vld [vmem:[#allocation5 + $0x18] sm:$0xf]
    %v1475 = vld [vmem:[#allocation5 + $0x1c] sm:$0xf]
    %v1476 = vld [vmem:[%s2 + $0x1] sm:$0x1]
    %v1477 = vpack.c.bf16 %v1471, %v1470
    %v1478 = vlaneseq
    %v1479 = vshrl.u32 %v1478, 7
    %v1480 = vsub.s32 0, %v1479
    %v1481 = vrot.slane %v1476, %v1480
    %v1486 = vunpack.c.l.b16 %v1472
    %v1487 = vunpack.c.l.b16 %v1473
    %v1488 = vunpack.c.l.b16 %v1474
    %v1489 = vunpack.c.l.b16 %v1475
    %v1490 = vpack.c.b16 %v1487, %v1486
    %v1491 = vpack.c.b16 %v1489, %v1488
    %v1495 = vsel %vm68, %v1477, 0
    %1497 = vmatprep.subr.bf16.mxu0 0
    %1498 = vmatpush1.bf16.msra.mxu0 %v1490
    %1499 = vmatprep.subr.bf16.mxu0 0
    %1500 = vmatpush1.bf16.msra.mxu0 %v1491
    %1501 = vmatprep.subr.bf16.mxu0 0
    %1502 = vmatpush1.bf16.msra.mxu0 0
    %1503 = vmatprep.subr.bf16.mxu0 0
    %1504 = vmatpush1.bf16.msra.mxu0 0
    %1505 = vmatprep.subr.bf16.mxu0 0
    %1506 = vmatpush1.bf16.msra.mxu0 0
    %1507 = vmatprep.subr.bf16.mxu0 0
    %1508 = vmatpush1.bf16.msra.mxu0 0
    %1509 = vmatprep.subr.bf16.mxu0 0
    %1510 = vmatpush1.bf16.msra.mxu0 0
    %1511 = vmatprep.subr.bf16.mxu0 0
    %1512 = vmatpush1.bf16.msra.mxu0 0
    %1513 = vmatprep.subr.bf16.mxu0 0
    %1514 = vmatpush1.bf16.msra.mxu0 0
    %1515 = vmatprep.subr.bf16.mxu0 0
    %1516 = vmatpush1.bf16.msra.mxu0 0
    %1517 = vmatprep.subr.bf16.mxu0 0
    %1518 = vmatpush1.bf16.msra.mxu0 0
    %1519 = vmatprep.subr.bf16.mxu0 0
    %1520 = vmatpush1.bf16.msra.mxu0 0
    %1521 = vmatprep.subr.bf16.mxu0 0
    %1522 = vmatpush1.bf16.msra.mxu0 0
    %1523 = vmatprep.subr.bf16.mxu0 0
    %1524 = vmatpush1.bf16.msra.mxu0 0
    %1525 = vmatprep.subr.bf16.mxu0 0
    %1526 = vmatpush1.bf16.msra.mxu0 0
    %1527 = vmatprep.subr.bf16.mxu0 0
    %1528 = vmatpush1.bf16.msra.mxu0 0
    %1529 = vmatprep.mubr.bf16.mxu0 0
    %1530 = vmatmul.mubr.bf16.gmra.mrb[0].mxu0 %v1495
    %v1531 = vpop.f32.mrb[0].mxu0
    %v1532 = vadd.f32 %v1481, %v1531
    %v1533 = vpop.f32.mrb[0].mxu0
    %v1534 = vpop.f32.mrb[0].mxu0
    %v1535 = vadd.f32 %v1481, %v1534
    %v1536 = vpop.f32.mrb[0].mxu0
    %1537 = vdwg.mxu0
    %v1538 = vld [vmem:[%s2 + $0x2] sm:$0x1]
    %v1539 = vld [vmem:[%s2 + $0x3] sm:$0x1]
    %v1540 = vadd.f32 %v1532, %v44
    %v1541 = vadd.f32 %v1535, %v45
    %v1542 = vsel %vm68, %v1540, 0.0
    %1543 = vadd.xlane.f32.xlu0 %v1542
    %v1544 = vpop.xlane.xlu0 %1543
    %v1545 = vsel %vm68, %v1541, 0.0
    %1546 = vadd.xlane.f32.xlu0 %v1545
    %v1547 = vpop.xlane.xlu0 %1546
    %v1548 = vrcp.pop 32.0
    %v1549 = vmul.f32 %v1544, %v1548
    %v1550 = vmul.f32 %v1547, %v1548
    %v1551 = vsub.f32 %v1540, %v1549
    %v1552 = vsub.f32 %v1541, %v1550
    %v1553 = vmul.f32 %v1551, %v1551
    %v1554 = vmul.f32 %v1552, %v1552
    %v1555 = vsel %vm68, %v1553, 0.0
    %1556 = vadd.xlane.f32.xlu0 %v1555
    %v1557 = vpop.xlane.xlu0 %1556
    %v1558 = vsel %vm68, %v1554, 0.0
    %1559 = vadd.xlane.f32.xlu0 %v1558
    %v1560 = vpop.xlane.xlu0 %1559
    %v1561 = vmul.f32 %v1557, %v1548
    %v1562 = vmul.f32 %v1560, %v1548
    %v1563 = vadd.f32 %v1561, 1e-05
    %v1564 = vadd.f32 %v1562, 1e-05
    %v1565 = vrsqrt.pop %v1563
    %v1566 = vrsqrt.pop %v1564
    %v1567 = vmul.f32 %v1551, %v1565
    %v1568 = vmul.f32 %v1552, %v1566
    %v1569 = vlaneseq
    %v1570 = vshrl.u32 %v1569, 7
    %v1571 = vsub.s32 0, %v1570
    %v1572 = vrot.slane %v1538, %v1571
    %v1573 = vmul.f32 %v1567, %v1572
    %v1574 = vmul.f32 %v1568, %v1572
    %v1575 = vlaneseq
    %v1576 = vshrl.u32 %v1575, 7
    %v1577 = vsub.s32 0, %v1576
    %v1578 = vrot.slane %v1539, %v1577
    %v1579 = vadd.f32 %v1573, %v1578
    %v1580 = vadd.f32 %v1574, %v1578
    %v1581 = vld [vmem:[#allocation5 + $0x20] sm:$0xf]
    %v1582 = vld [vmem:[#allocation5 + $0x24] sm:$0xf]
    %v1583 = vld [vmem:[#allocation5 + $0x28] sm:$0xf]
    %v1584 = vld [vmem:[#allocation5 + $0x2c] sm:$0xf]
    %v1585 = vld [vmem:[%s2 + $0x4] sm:$0x1]
    %v1586 = vpack.c.bf16 %v1580, %v1579
    %v1587 = vlaneseq
    %v1588 = vshrl.u32 %v1587, 7
    %v1589 = vsub.s32 0, %v1588
    %v1590 = vrot.slane %v1585, %v1589
    %v1595 = vunpack.c.l.b16 %v1581
    %v1596 = vunpack.c.l.b16 %v1582
    %v1597 = vunpack.c.l.b16 %v1583
    %v1598 = vunpack.c.l.b16 %v1584
    %v1599 = vpack.c.b16 %v1596, %v1595
    %v1600 = vpack.c.b16 %v1598, %v1597
    %v1604 = vsel %vm68, %v1586, 0
    %1606 = vmatprep.subr.bf16.mxu0 0
    %1607 = vmatpush1.bf16.msra.mxu0 %v1599
    %1608 = vmatprep.subr.bf16.mxu0 0
    %1609 = vmatpush1.bf16.msra.mxu0 %v1600
    %1610 = vmatprep.subr.bf16.mxu0 0
    %1611 = vmatpush1.bf16.msra.mxu0 0
    %1612 = vmatprep.subr.bf16.mxu0 0
    %1613 = vmatpush1.bf16.msra.mxu0 0
    %1614 = vmatprep.subr.bf16.mxu0 0
    %1615 = vmatpush1.bf16.msra.mxu0 0
    %1616 = vmatprep.subr.bf16.mxu0 0
    %1617 = vmatpush1.bf16.msra.mxu0 0
    %1618 = vmatprep.subr.bf16.mxu0 0
    %1619 = vmatpush1.bf16.msra.mxu0 0
    %1620 = vmatprep.subr.bf16.mxu0 0
    %1621 = vmatpush1.bf16.msra.mxu0 0
    %1622 = vmatprep.subr.bf16.mxu0 0
    %1623 = vmatpush1.bf16.msra.mxu0 0
    %1624 = vmatprep.subr.bf16.mxu0 0
    %1625 = vmatpush1.bf16.msra.mxu0 0
    %1626 = vmatprep.subr.bf16.mxu0 0
    %1627 = vmatpush1.bf16.msra.mxu0 0
    %1628 = vmatprep.subr.bf16.mxu0 0
    %1629 = vmatpush1.bf16.msra.mxu0 0
    %1630 = vmatprep.subr.bf16.mxu0 0
    %1631 = vmatpush1.bf16.msra.mxu0 0
    %1632 = vmatprep.subr.bf16.mxu0 0
    %1633 = vmatpush1.bf16.msra.mxu0 0
    %1634 = vmatprep.subr.bf16.mxu0 0
    %1635 = vmatpush1.bf16.msra.mxu0 0
    %1636 = vmatprep.subr.bf16.mxu0 0
    %1637 = vmatpush1.bf16.msra.mxu0 0
    %1638 = vmatprep.mubr.bf16.mxu0 0
    %1639 = vmatmul.mubr.bf16.gmra.mrb[0].mxu0 %v1604
    %v1640 = vpop.f32.mrb[0].mxu0
    %v1641 = vadd.f32 %v1590, %v1640
    %v1642 = vpop.f32.mrb[0].mxu0
    %v1643 = vpop.f32.mrb[0].mxu0
    %v1644 = vadd.f32 %v1590, %v1643
    %v1645 = vpop.f32.mrb[0].mxu0
    %1646 = vdwg.mxu0
    %v1647 = vld [vmem:[%s2 + $0x5] sm:$0x1]
    %v1648 = vld [vmem:[%s2 + $0x6] sm:$0x1]
    %vm1649 = vcmask 523264
    %v1650 = vsel %vm1649, %v1641, 0.0
    %1651 = vadd.xlane.f32.xlu0 %v1650
    %v1652 = vpop.xlane.xlu0 %1651
    %v1653 = vsel %vm1649, %v1644, 0.0
    %1654 = vadd.xlane.f32.xlu0 %v1653
    %v1655 = vpop.xlane.xlu0 %1654
    %v1656 = vrcp.pop 64.0
    %v1657 = vmul.f32 %v1652, %v1656
    %v1658 = vmul.f32 %v1655, %v1656
    %v1659 = vsub.f32 %v1641, %v1657
    %v1660 = vsub.f32 %v1644, %v1658
    %v1661 = vmul.f32 %v1659, %v1659
    %v1662 = vmul.f32 %v1660, %v1660
    %v1663 = vsel %vm1649, %v1661, 0.0
    %1664 = vadd.xlane.f32.xlu0 %v1663
    %v1665 = vpop.xlane.xlu0 %1664
    %v1666 = vsel %vm1649, %v1662, 0.0
    %1667 = vadd.xlane.f32.xlu0 %v1666
    %v1668 = vpop.xlane.xlu0 %1667
    %v1669 = vmul.f32 %v1665, %v1656
    %v1670 = vmul.f32 %v1668, %v1656
    %v1671 = vadd.f32 %v1669, 1e-05
    %v1672 = vadd.f32 %v1670, 1e-05
    %v1673 = vrsqrt.pop %v1671
    %v1674 = vrsqrt.pop %v1672
    %v1675 = vmul.f32 %v1659, %v1673
    %v1676 = vmul.f32 %v1660, %v1674
    %v1677 = vlaneseq
    %v1678 = vshrl.u32 %v1677, 7
    %v1679 = vsub.s32 0, %v1678
    %v1680 = vrot.slane %v1647, %v1679
    %v1681 = vmul.f32 %v1675, %v1680
    %v1682 = vmul.f32 %v1676, %v1680
    %v1683 = vlaneseq
    %v1684 = vshrl.u32 %v1683, 7
    %v1685 = vsub.s32 0, %v1684
    %v1686 = vrot.slane %v1648, %v1685
    %v1687 = vadd.f32 %v1681, %v1686
    %v1688 = vadd.f32 %v1682, %v1686
    %v1689 = vmax.f32 %v1687, 0.0
    %v1690 = vmax.f32 %v1688, 0.0
    %v1691 = vld [vmem:[#allocation5 + $0x30] sm:$0xf]
    %v1692 = vld [vmem:[#allocation5 + $0x34] sm:$0xf]
    %v1693 = vld [vmem:[#allocation5 + $0x38] sm:$0xf]
    %v1694 = vld [vmem:[#allocation5 + $0x3c] sm:$0xf]
    %v1695 = vld [vmem:[#allocation5 + $0x40] sm:$0xf]
    %v1696 = vld [vmem:[#allocation5 + $0x44] sm:$0xf]
    %v1697 = vld [vmem:[#allocation5 + $0x48] sm:$0xf]
    %v1698 = vld [vmem:[#allocation5 + $0x4c] sm:$0xf]
    %v1699 = vld [vmem:[%s2 + $0x7] sm:$0x1]
    %v1700 = vpack.c.bf16 %v1690, %v1689
    %v1701 = vlaneseq
    %v1702 = vshrl.u32 %v1701, 7
    %v1703 = vsub.s32 0, %v1702
    %v1704 = vrot.slane %v1699, %v1703
    %v1713 = vunpack.c.l.b16 %v1691
    %v1714 = vunpack.c.l.b16 %v1692
    %v1715 = vunpack.c.l.b16 %v1693
    %v1716 = vunpack.c.l.b16 %v1694
    %v1717 = vunpack.c.l.b16 %v1695
    %v1718 = vunpack.c.l.b16 %v1696
    %v1719 = vunpack.c.l.b16 %v1697
    %v1720 = vunpack.c.l.b16 %v1698
    %v1721 = vpack.c.b16 %v1714, %v1713
    %v1722 = vpack.c.b16 %v1716, %v1715
    %v1723 = vpack.c.b16 %v1718, %v1717
    %v1724 = vpack.c.b16 %v1720, %v1719
    %v1730 = vsel %vm1649, %v1700, 0
    %1732 = vmatprep.subr.bf16.mxu0 0
    %1733 = vmatpush1.bf16.msra.mxu0 %v1721
    %1734 = vmatprep.subr.bf16.mxu0 0
    %1735 = vmatpush1.bf16.msra.mxu0 %v1722
    %1736 = vmatprep.subr.bf16.mxu0 0
    %1737 = vmatpush1.bf16.msra.mxu0 %v1723
    %1738 = vmatprep.subr.bf16.mxu0 0
    %1739 = vmatpush1.bf16.msra.mxu0 %v1724
    %1740 = vmatprep.subr.bf16.mxu0 0
    %1741 = vmatpush1.bf16.msra.mxu0 0
    %1742 = vmatprep.subr.bf16.mxu0 0
    %1743 = vmatpush1.bf16.msra.mxu0 0
    %1744 = vmatprep.subr.bf16.mxu0 0
    %1745 = vmatpush1.bf16.msra.mxu0 0
    %1746 = vmatprep.subr.bf16.mxu0 0
    %1747 = vmatpush1.bf16.msra.mxu0 0
    %1748 = vmatprep.subr.bf16.mxu0 0
    %1749 = vmatpush1.bf16.msra.mxu0 0
    %1750 = vmatprep.subr.bf16.mxu0 0
    %1751 = vmatpush1.bf16.msra.mxu0 0
    %1752 = vmatprep.subr.bf16.mxu0 0
    %1753 = vmatpush1.bf16.msra.mxu0 0
    %1754 = vmatprep.subr.bf16.mxu0 0
    %1755 = vmatpush1.bf16.msra.mxu0 0
    %1756 = vmatprep.subr.bf16.mxu0 0
    %1757 = vmatpush1.bf16.msra.mxu0 0
    %1758 = vmatprep.subr.bf16.mxu0 0
    %1759 = vmatpush1.bf16.msra.mxu0 0
    %1760 = vmatprep.subr.bf16.mxu0 0
    %1761 = vmatpush1.bf16.msra.mxu0 0
    %1762 = vmatprep.subr.bf16.mxu0 0
    %1763 = vmatpush1.bf16.msra.mxu0 0
    %1764 = vmatprep.mubr.bf16.mxu0 0
    %1765 = vmatmul.mubr.bf16.gmra.mrb[0].mxu0 %v1730
    %v1766 = vpop.f32.mrb[0].mxu0
    %v1767 = vadd.f32 %v1704, %v1766
    %v1768 = vpop.f32.mrb[0].mxu0
    %v1769 = vpop.f32.mrb[0].mxu0
    %v1770 = vadd.f32 %v1704, %v1769
    %v1771 = vpop.f32.mrb[0].mxu0
    %1772 = vdwg.mxu0
    %v1773 = vadd.f32 %v1767, %v1579
    %v1774 = vadd.f32 %v1770, %v1580
    %1775 = vst.msk [vmem:[#allocation7] sm:$0xff] %vm68, %v1773
    %1776 = vst.msk [vmem:[#allocation7 + $0x8] sm:$0xff] %vm68, %v1774
    // Predicated region
    $region22: #{transformer_layer.1} parent=1 // pred_check
      _
    $region23: #{transformer_layer.1} parent=1 // pred_check_branch
      %1778 = sbr.rel (0) target = $region25
    $region24: #{transformer_layer.1} parent=1 // pred_region
      %s1780 = ssub.s32 256, 256
      %1781 = vsyncadd [#allocation4], %s1780
      %s1782 = sshll.u32 [#allocation7], 4
      %s1783 = int_to_ptr.vmem [resolvable:$true] %s1782
      %1788 = dma.vmem_to_hbm [thread:$0]  %s1783, 256, %s3, [#allocation4], 128, 128, 8
    $region25: #{transformer_layer.1} parent=1 // pred_fallthru
      _
    // Predicated region
    $region26: #{transformer_layer.1} parent=1 // pred_check
      _
    $region27: #{transformer_layer.1} parent=1 // pred_check_branch
      %1790 = sbr.rel (0) target = $region29
    $region28: #{transformer_layer.1} parent=1 // pred_region
      %1791 = dma.done [#allocation4], 256
    $region29: #{transformer_layer.1} parent=1 // pred_fallthru
      _
    %1792 = vsyncpa [#allocation3], 1
    %1793 = vsyncpa [#allocation6], 1
    %1794 = vsyncpa [#allocation4], 1

</llo_original>
